<compile_context>
chip_gen: v6e
topology: v6e:2x2x1
jax: 0.10.0
libtpu: 0.0.40
codegen_flags: <defaults>
</compile_context>

<pallas_src>
import math

import numpy as np
import jax
import jax.numpy as jnp
from jax.experimental import pallas as pl
from jax.experimental.pallas import tpu as pltpu

# ----------------------------- configuration --------------------------------
INPLANES = 16
PLANES = 4
EXPANSION = 4
STRIDE = 1
DILATION = 1
N_BATCH = 2
HEIGHT = 16
WIDTH = 16

MASK_K = 3                    # mask_kernel
MASK_PROB = 0.9526
MASK_BIAS = math.log(MASK_PROB / (1.0 - MASK_PROB))
MASK_HARD_THRESHOLD = 0.5
LG_K = 3                      # lg_kernel
LG_INIT_SIGMA = 1.0
LOSS_WEIGHT = 0.1
BN_EPS = 1e-5

CPAD = 8                      # conv1-out/mask rows padded to one sublane group


# ----------------------------- helpers ---------------------------------------
def bn_fold(bn):
    scale = bn["gamma"] / jnp.sqrt(bn["var"] + BN_EPS)
    shift = bn["beta"] - bn["mean"] * scale
    return scale, shift


def gaussian_kernel(k, sigma):
    r = jnp.arange(k, dtype=jnp.float32) - (k - 1) / 2.0
    g = jnp.exp(-(r[:, None] ** 2 + r[None, :] ** 2) / (2.0 * sigma ** 2))
    return g / jnp.sum(g)


def tap_offsets(w, dilation=1):
    """Flattened (row-major H*W) source offset of each 3x3 tap, t = ki*3+kj."""
    return [(ki - 1) * dilation * w + (kj - 1) * dilation
            for ki in range(3) for kj in range(3)]


def tap_valid_masks(h, w, dilation=1):
    """valid[t, q] = 1 iff the source pixel of tap t for output q is in-image
    (zero padding).  Also kills the wrap-around of the flattened lane roll."""
    m = h * w
    v = np.zeros((9, m), dtype=np.float32)
    t = 0
    for ki in range(3):
        for kj in range(3):
            di, dj = (ki - 1) * dilation, (kj - 1) * dilation
            for hh in range(h):
                if 0 <= hh + di < h:
                    for ww in range(w):
                        if 0 <= ww + dj < w:
                            v[t, hh * w + ww] = 1.0
            t += 1
    return v


# ----------------------------- Pallas kernel ---------------------------------
def _make_fused_kernel(shifts):
    """shifts[t]: static lane-roll amount so rolled(a,t)[q] == a[q + offset_t]."""
    f32 = jnp.float32
    bf16 = jnp.bfloat16

    def rolled(a, t):
        s = shifts[t]
        return a if s == 0 else pltpu.roll(a, shift=s, axis=1)

    def kernel(x_ref, valid_ref, gv1_ref, gv2_ref, wc_ref, bc_ref,
               w2_ref, b2_ref, w3_ref, b3_ref, out_ref, msum_ref):
        x = x_ref[0]                                            # (Cin, M) f32

        def im2col(a):
            # 9 masked lane-rolls stacked on the sublane axis (in-VMEM im2col).
            return jnp.concatenate(
                [rolled(a, t) * valid_ref[t] for t in range(9)], axis=0)

        def lg_resample(act, mask, gv_ref):
            # 3x3 gaussian smoothing of (act*mask) and of mask via the same
            # rolls; gaussian tap * boundary mask is pre-folded into gv_ref.
            am = act * mask
            g0 = gv_ref[0]
            num = rolled(am, 0) * g0
            den = rolled(mask, 0) * g0
            for t in range(1, 9):
                g = gv_ref[t]
                num = num + rolled(am, t) * g
                den = den + rolled(mask, t) * g
            interp = num * pl.reciprocal(den + 1e-5, approx=True)
            return mask * act + (1.0 - mask) * interp

        # conv1 (1x1, BN1 folded) fused with both 3x3 mask convs: ONE matmul.
        # Kept in f32 so the hard mask gate cannot flip vs. the reference.
        x9 = im2col(x)                                          # (9*Cin, M)
        pre = jnp.dot(wc_ref[...], x9,
                      preferred_element_type=f32) + bc_ref[...]  # (8, M)

        m_sig = jax.nn.sigmoid(pre[PLANES:PLANES + 2])           # (2, M) f32
        msum_ref[0] = jnp.sum(m_sig, axis=-1, keepdims=True)     # loss partials
        m_hard = jnp.where(m_sig >= MASK_HARD_THRESHOLD, m_sig, 0.0)
        mask1 = m_hard[0:1]
        mask2 = m_hard[1:2]

        # act1 rows 0..3 = relu(conv1); rows 4..7 only ever meet zero weights.
        act1 = jnp.maximum(pre, 0.0)                             # (8, M)

        # local-gaussian re-sampling of out_conv1
        act1 = lg_resample(act1, mask1, gv1_ref)

        # conv2 (3x3, BN2 folded) + relu: one stacked matmul, bf16 MXU operands
        y9 = im2col(act1).astype(bf16)                           # (9*8, M)
        out2 = jnp.maximum(
            jnp.dot(w2_ref[...], y9, preferred_element_type=f32) + b2_ref[...],
            0.0)                                                 # (P, M)

        # local-gaussian re-sampling of out_conv2
        out2 = lg_resample(out2, mask2, gv2_ref)

        # conv3 (1x1, BN3 folded) + residual + final relu
        out3 = jnp.dot(w3_ref[...], out2.astype(bf16),
                       preferred_element_type=f32) + b3_ref[...] + x
        out_ref[0] = jnp.maximum(out3, 0.0)

    return kernel


# ----------------------------- wrapper ----------------------------------------
def bottleneck_forward(x_nchw, loss, params):
    """Inference forward of Bottleneck. Returns (out_nchw, loss)."""
    n, cin, h, w = x_nchw.shape
    m = h * w
    assert STRIDE == 1 and DILATION == 1
    assert cin == PLANES * EXPANSION               # downsample is None
    cout = PLANES * EXPANSION
    f32, bf16 = jnp.float32, jnp.bfloat16

    x_c = x_nchw.reshape(n, cin, m).astype(f32)    # NCHW, HW flattened on lanes

    # Fold BN scales into conv weights; only (C, 1) shifts enter the kernel.
    s1, b1 = bn_fold(params["bn1"])
    s2, b2 = bn_fold(params["bn2"])
    s3, b3 = bn_fold(params["bn3"])
    w1 = params["conv1_w"][:, :, 0, 0] * s1[:, None]                     # (P, Cin)
    w2_taps = (jnp.transpose(params["conv2_w"], (2, 3, 0, 1))
               .reshape(9, PLANES, PLANES) * s2[None, :, None])          # (9, P, P)
    w3 = params["conv3_w"][:, :, 0, 0] * s3[:, None]                     # (4P, P)

    # Merged mask convs (Cout=2), flattened over taps.
    wm_full = jnp.concatenate([params["conv1_mask_w"],
                               params["conv2_mask_w"]], axis=0)          # (2,Cin,3,3)
    wm = jnp.transpose(wm_full, (2, 3, 0, 1)).reshape(9, 2, cin)         # (9, 2, Cin)
    wm_flat = jnp.transpose(wm, (1, 0, 2)).reshape(2, 9 * cin)           # (2, 9*Cin)
    bm = jnp.stack([params["conv1_mask_b"][0], params["conv2_mask_b"][0]])

    # Combined conv1(center tap) + mask weight: one (8, 9*Cin) LHS. Rows 6..7
    # and the padded input channels of conv2 carry zero weights.
    wc = jnp.zeros((CPAD, 9 * cin), f32)
    wc = wc.at[:PLANES, 4 * cin:5 * cin].set(w1)
    wc = wc.at[PLANES:PLANES + 2, :].set(wm_flat)
    bc = jnp.zeros((CPAD, 1), f32)
    bc = bc.at[:PLANES, 0].set(b1).at[PLANES:PLANES + 2, 0].set(bm)

    # conv2 weight over the 8-padded im2col: (P, 9*8), padded channels zero.
    w2_pad = jnp.zeros((9, PLANES, CPAD), f32).at[:, :, :PLANES].set(w2_taps)
    w2_flat = jnp.transpose(w2_pad, (1, 0, 2)).reshape(PLANES, 9 * CPAD)

    # Per-tap boundary masks and gaussian-folded masks (tiny constants).
    valid_np = tap_valid_masks(h, w, DILATION)                           # (9, M)
    g1 = gaussian_kernel(LG_K, params["conv1_sigma"]).reshape(9, 1)
    g2 = gaussian_kernel(LG_K, params["conv2_sigma"]).reshape(9, 1)
    valid = jnp.asarray(valid_np)
    gv1 = (g1 * valid).reshape(9, 1, m)
    gv2 = (g2 * valid).reshape(9, 1, m)
    valid = valid.reshape(9, 1, m)

    shifts = tuple((-o) % m for o in tap_offsets(w, DILATION))
    kernel = _make_fused_kernel(shifts)

    const2 = lambda b: (0, 0)
    const3 = lambda b: (0, 0, 0)
    batched = lambda b: (b, 0, 0)

    out_c, msum = pl.pallas_call(
        kernel,
        out_shape=(jax.ShapeDtypeStruct((n, cout, m), f32),
                   jax.ShapeDtypeStruct((n, 2, 1), f32)),
        grid_spec=pltpu.PrefetchScalarGridSpec(
            num_scalar_prefetch=0,
            grid=(n,),
            in_specs=[
                pl.BlockSpec((1, cin, m), batched),          # x  (per image)
                pl.BlockSpec((9, 1, m), const3),             # boundary masks
                pl.BlockSpec((9, 1, m), const3),             # g1 * masks
                pl.BlockSpec((9, 1, m), const3),             # g2 * masks
                pl.BlockSpec((CPAD, 9 * cin), const2),       # conv1+mask weights
                pl.BlockSpec((CPAD, 1), const2),             # conv1+mask shifts
                pl.BlockSpec((PLANES, 9 * CPAD), const2),    # conv2 weights (bf16)
                pl.BlockSpec((PLANES, 1), const2),           # conv2 shift
                pl.BlockSpec((cout, PLANES), const2),        # conv3 weights (bf16)
                pl.BlockSpec((cout, 1), const2),             # conv3 shift
            ],
            out_specs=[
                pl.BlockSpec((1, cout, m), batched),         # out, dense NCHW
                pl.BlockSpec((1, 2, 1), batched),            # mask-sigmoid sums
            ],
        ),
        compiler_params=pltpu.CompilerParams(
            dimension_semantics=("parallel",)),              # v7x: both TCs
    )(x_c, valid, gv1, gv2, wc, bc,
      w2_flat.astype(bf16), b2.reshape(PLANES, 1),
      w3.astype(bf16), b3.reshape(cout, 1))

    out = out_c.reshape(n, cout, h, w)
    denom = n * m
    loss_out = loss + (0.25 * jnp.sum(msum[:, 0, 0]) / denom +
                       0.75 * jnp.sum(msum[:, 1, 0]) / denom) * LOSS_WEIGHT
    return out, loss_out


# ----------------------------- pure-JAX reference -----------------------------
def reference_forward(x, loss, p):
    """XLA reference (lax.conv, HIGHEST precision) of the same forward pass."""
    hp = jax.lax.Precision.HIGHEST

    def conv(inp, w, stride=1, pad=0, dil=1, groups=1):
        return jax.lax.conv_general_dilated(
            inp, w, window_strides=(stride, stride),
            padding=((pad, pad), (pad, pad)), rhs_dilation=(dil, dil),
            dimension_numbers=("NCHW", "OIHW", "NCHW"),
            feature_group_count=groups, precision=hp)

    def bn(v, b):
        s, sh = bn_fold(b)
        return v * s[None, :, None, None] + sh[None, :, None, None]

    residual = x
    out = jax.nn.relu(bn(conv(x, p["conv1_w"]), p["bn1"]))

    m1_logit = conv(x, p["conv1_mask_w"], pad=MASK_K // 2) + \
        p["conv1_mask_b"][None, :, None, None]
    m1_sig = jax.nn.sigmoid(m1_logit)
    m1 = m1_sig * (m1_sig >= MASK_HARD_THRESHOLD).astype(jnp.float32)
    g1 = gaussian_kernel(LG_K, p["conv1_sigma"])[None, None]
    norm1 = conv(m1, g1, pad=LG_K // 2) + 1e-5
    interp1 = conv(out * m1, jnp.tile(g1, (PLANES, 1, 1, 1)), pad=LG_K // 2,
                   groups=PLANES) / norm1
    out = m1 * out + (1.0 - m1) * interp1

    out = jax.nn.relu(bn(conv(out, p["conv2_w"], stride=STRIDE, pad=DILATION,
                              dil=DILATION), p["bn2"]))

    m2_logit = conv(x, p["conv2_mask_w"], stride=STRIDE, pad=MASK_K // 2) + \
        p["conv2_mask_b"][None, :, None, None]
    m2_sig = jax.nn.sigmoid(m2_logit)
    m2 = m2_sig * (m2_sig >= MASK_HARD_THRESHOLD).astype(jnp.float32)
    g2 = gaussian_kernel(LG_K, p["conv2_sigma"])[None, None]
    norm2 = conv(m2, g2, pad=LG_K // 2) + 1e-5
    interp2 = conv(out * m2, jnp.tile(g2, (PLANES, 1, 1, 1)), pad=LG_K // 2,
                   groups=PLANES) / norm2
    out = m2 * out + (1.0 - m2) * interp2

    out = bn(conv(out, p["conv3_w"]), p["bn3"]) + residual
    out = jax.nn.relu(out)
    loss_out = loss + (0.25 * jnp.mean(m1_sig) +
                       0.75 * jnp.mean(m2_sig)) * LOSS_WEIGHT
    return out, loss_out


# ----------------------------- params ----------------------------------------
def init_params(key):
    ks = jax.random.split(key, 16)

    def nrm(k, shape, s=0.1):
        return s * jax.random.normal(k, shape, dtype=jnp.float32)

    def bn_init(k, c):
        k1, k2, k3, k4 = jax.random.split(k, 4)
        return dict(
            gamma=1.0 + 0.1 * jax.random.normal(k1, (c,), jnp.float32),
            beta=0.1 * jax.random.normal(k2, (c,), jnp.float32),
            mean=0.1 * jax.random.normal(k3, (c,), jnp.float32),
            var=jax.random.uniform(k4, (c,), jnp.float32, 0.5, 1.5),
        )

    return dict(
        conv1_w=nrm(ks[0], (PLANES, INPLANES, 1, 1)),
        bn1=bn_init(ks[1], PLANES),
        conv2_w=nrm(ks[2], (PLANES, PLANES, 3, 3)),
        bn2=bn_init(ks[3], PLANES),
        conv3_w=nrm(ks[4], (PLANES * EXPANSION, PLANES, 1, 1)),
        bn3=bn_init(ks[5], PLANES * EXPANSION),
        # module inits mask convs to (weight=0, bias=mask_bias); small random
        # weights keep the mask path non-trivial while staying near that init.
        conv1_mask_w=nrm(ks[6], (1, INPLANES, MASK_K, MASK_K), 0.05),
        conv1_mask_b=jnp.array([MASK_BIAS], jnp.float32),
        conv2_mask_w=nrm(ks[7], (1, INPLANES, MASK_K, MASK_K), 0.05),
        conv2_mask_b=jnp.array([MASK_BIAS], jnp.float32),
        conv1_sigma=jnp.float32(LG_INIT_SIGMA),
        conv2_sigma=jnp.float32(LG_INIT_SIGMA),
    )


# ----------------------------- main ------------------------------------------
if __name__ == "__main__":
    key = jax.random.PRNGKey(0)
    kx, kp = jax.random.split(key)
    x = jax.random.normal(kx, (N_BATCH, INPLANES, HEIGHT, WIDTH), jnp.float32)
    loss = jnp.float32(0.0)
    params = init_params(kp)

    fwd = jax.jit(bottleneck_forward)
    out, loss_out = fwd(x, loss, params)
    jax.block_until_ready(out)
    jax.block_until_ready(loss_out)

    out_ref, loss_ref = reference_forward(x, loss, params)

    assert out.shape == (N_BATCH, PLANES * EXPANSION,
                         HEIGHT // STRIDE, WIDTH // STRIDE)
    assert bool(jnp.all(jnp.isfinite(out))) and bool(jnp.isfinite(loss_out))
    assert bool(jnp.allclose(out, out_ref, atol=3e-2, rtol=3e-2)), \
        float(jnp.max(jnp.abs(out - out_ref)))
    assert bool(jnp.allclose(loss_out, loss_ref, atol=1e-3, rtol=1e-3))
    print("KERNEL_OK")
</pallas_src>

<mosaic_0001>
module attributes {stable_mosaic.version = 11 : i64} {
  func.func @kernel(%arg0: i32, %arg1: memref<1x16x256xf32, #tpu.memory_space<vmem>>, %arg2: memref<9x1x256xf32, #tpu.memory_space<vmem>>, %arg3: memref<9x1x256xf32, #tpu.memory_space<vmem>>, %arg4: memref<9x1x256xf32, #tpu.memory_space<vmem>>, %arg5: memref<8x144xf32, #tpu.memory_space<vmem>>, %arg6: memref<8x1xf32, #tpu.memory_space<vmem>>, %arg7: memref<4x72xbf16, #tpu.memory_space<vmem>>, %arg8: memref<4x1xf32, #tpu.memory_space<vmem>>, %arg9: memref<16x4xbf16, #tpu.memory_space<vmem>>, %arg10: memref<16x1xf32, #tpu.memory_space<vmem>>, %arg11: memref<1x16x256xf32, #tpu.memory_space<vmem>>, %arg12: memref<1x2x1xf32, #tpu.memory_space<vmem>>) attributes {dimension_semantics = [#tpu.dimension_semantics<parallel>], iteration_bounds = array<i64: 2>, scalar_prefetch = 0 : i64, scratch_operands = 0 : i64, tpu.core_type = #tpu.core_type<tc>, window_params = [{transform_indices = @transform_0, window_bounds = array<i64: 1, 16, 256>}, {pipeline_mode = #tpu.pipeline_mode<synchronous>, transform_indices = @transform_1, window_bounds = array<i64: 9, 1, 256>}, {pipeline_mode = #tpu.pipeline_mode<synchronous>, transform_indices = @transform_2, window_bounds = array<i64: 9, 1, 256>}, {pipeline_mode = #tpu.pipeline_mode<synchronous>, transform_indices = @transform_3, window_bounds = array<i64: 9, 1, 256>}, {pipeline_mode = #tpu.pipeline_mode<synchronous>, transform_indices = @transform_4, window_bounds = array<i64: 8, 144>}, {pipeline_mode = #tpu.pipeline_mode<synchronous>, transform_indices = @transform_5, window_bounds = array<i64: 8, 1>}, {pipeline_mode = #tpu.pipeline_mode<synchronous>, transform_indices = @transform_6, window_bounds = array<i64: 4, 72>}, {pipeline_mode = #tpu.pipeline_mode<synchronous>, transform_indices = @transform_7, window_bounds = array<i64: 4, 1>}, {pipeline_mode = #tpu.pipeline_mode<synchronous>, transform_indices = @transform_8, window_bounds = array<i64: 16, 4>}, {pipeline_mode = #tpu.pipeline_mode<synchronous>, transform_indices = @transform_9, window_bounds = array<i64: 16, 1>}, {transform_indices = @transform_10, window_bounds = array<i64: 1, 16, 256>}, {transform_indices = @transform_11, window_bounds = array<i64: 1, 2, 1>}]} {
    %c0 = arith.constant 0 : index
    %c0_0 = arith.constant 0 : index
    %c0_1 = arith.constant 0 : index
    %0 = vector.load %arg1[%c0, %c0_0, %c0_1] : memref<1x16x256xf32, #tpu.memory_space<vmem>>, vector<1x16x256xf32>
    %1 = vector.shape_cast %0 : vector<1x16x256xf32> to vector<16x256xf32>
    %c17_i32 = arith.constant 17 : i32
    %2 = tpu.dynamic_rotate %1 by %c17_i32 dim 1 : vector<16x256xf32>, i32 -> vector<16x256xf32>
    %c0_2 = arith.constant 0 : index
    %c0_3 = arith.constant 0 : index
    %c0_4 = arith.constant 0 : index
    %3 = vector.load %arg2[%c0_2, %c0_3, %c0_4] : memref<9x1x256xf32, #tpu.memory_space<vmem>>, vector<1x1x256xf32>
    %4 = vector.shape_cast %3 : vector<1x1x256xf32> to vector<1x256xf32>
    %5 = vector.broadcast %4 : vector<1x256xf32> to vector<16x256xf32>
    %6 = arith.mulf %2, %5 : vector<16x256xf32>
    %c16_i32 = arith.constant 16 : i32
    %7 = tpu.dynamic_rotate %1 by %c16_i32 dim 1 : vector<16x256xf32>, i32 -> vector<16x256xf32>
    %c1 = arith.constant 1 : index
    %c0_5 = arith.constant 0 : index
    %c0_6 = arith.constant 0 : index
    %8 = vector.load %arg2[%c1, %c0_5, %c0_6] : memref<9x1x256xf32, #tpu.memory_space<vmem>>, vector<1x1x256xf32>
    %9 = vector.shape_cast %8 : vector<1x1x256xf32> to vector<1x256xf32>
    %10 = vector.broadcast %9 : vector<1x256xf32> to vector<16x256xf32>
    %11 = arith.mulf %7, %10 : vector<16x256xf32>
    %c15_i32 = arith.constant 15 : i32
    %12 = tpu.dynamic_rotate %1 by %c15_i32 dim 1 : vector<16x256xf32>, i32 -> vector<16x256xf32>
    %c2 = arith.constant 2 : index
    %c0_7 = arith.constant 0 : index
    %c0_8 = arith.constant 0 : index
    %13 = vector.load %arg2[%c2, %c0_7, %c0_8] : memref<9x1x256xf32, #tpu.memory_space<vmem>>, vector<1x1x256xf32>
    %14 = vector.shape_cast %13 : vector<1x1x256xf32> to vector<1x256xf32>
    %15 = vector.broadcast %14 : vector<1x256xf32> to vector<16x256xf32>
    %16 = arith.mulf %12, %15 : vector<16x256xf32>
    %c1_i32 = arith.constant 1 : i32
    %17 = tpu.dynamic_rotate %1 by %c1_i32 dim 1 : vector<16x256xf32>, i32 -> vector<16x256xf32>
    %c3 = arith.constant 3 : index
    %c0_9 = arith.constant 0 : index
    %c0_10 = arith.constant 0 : index
    %18 = vector.load %arg2[%c3, %c0_9, %c0_10] : memref<9x1x256xf32, #tpu.memory_space<vmem>>, vector<1x1x256xf32>
    %19 = vector.shape_cast %18 : vector<1x1x256xf32> to vector<1x256xf32>
    %20 = vector.broadcast %19 : vector<1x256xf32> to vector<16x256xf32>
    %21 = arith.mulf %17, %20 : vector<16x256xf32>
    %c4 = arith.constant 4 : index
    %c0_11 = arith.constant 0 : index
    %c0_12 = arith.constant 0 : index
    %22 = vector.load %arg2[%c4, %c0_11, %c0_12] : memref<9x1x256xf32, #tpu.memory_space<vmem>>, vector<1x1x256xf32>
    %23 = vector.shape_cast %22 : vector<1x1x256xf32> to vector<1x256xf32>
    %24 = vector.broadcast %23 : vector<1x256xf32> to vector<16x256xf32>
    %25 = arith.mulf %1, %24 : vector<16x256xf32>
    %c255_i32 = arith.constant 255 : i32
    %26 = tpu.dynamic_rotate %1 by %c255_i32 dim 1 : vector<16x256xf32>, i32 -> vector<16x256xf32>
    %c5 = arith.constant 5 : index
    %c0_13 = arith.constant 0 : index
    %c0_14 = arith.constant 0 : index
    %27 = vector.load %arg2[%c5, %c0_13, %c0_14] : memref<9x1x256xf32, #tpu.memory_space<vmem>>, vector<1x1x256xf32>
    %28 = vector.shape_cast %27 : vector<1x1x256xf32> to vector<1x256xf32>
    %29 = vector.broadcast %28 : vector<1x256xf32> to vector<16x256xf32>
    %30 = arith.mulf %26, %29 : vector<16x256xf32>
    %c241_i32 = arith.constant 241 : i32
    %31 = tpu.dynamic_rotate %1 by %c241_i32 dim 1 : vector<16x256xf32>, i32 -> vector<16x256xf32>
    %c6 = arith.constant 6 : index
    %c0_15 = arith.constant 0 : index
    %c0_16 = arith.constant 0 : index
    %32 = vector.load %arg2[%c6, %c0_15, %c0_16] : memref<9x1x256xf32, #tpu.memory_space<vmem>>, vector<1x1x256xf32>
    %33 = vector.shape_cast %32 : vector<1x1x256xf32> to vector<1x256xf32>
    %34 = vector.broadcast %33 : vector<1x256xf32> to vector<16x256xf32>
    %35 = arith.mulf %31, %34 : vector<16x256xf32>
    %c240_i32 = arith.constant 240 : i32
    %36 = tpu.dynamic_rotate %1 by %c240_i32 dim 1 : vector<16x256xf32>, i32 -> vector<16x256xf32>
    %c7 = arith.constant 7 : index
    %c0_17 = arith.constant 0 : index
    %c0_18 = arith.constant 0 : index
    %37 = vector.load %arg2[%c7, %c0_17, %c0_18] : memref<9x1x256xf32, #tpu.memory_space<vmem>>, vector<1x1x256xf32>
    %38 = vector.shape_cast %37 : vector<1x1x256xf32> to vector<1x256xf32>
    %39 = vector.broadcast %38 : vector<1x256xf32> to vector<16x256xf32>
    %40 = arith.mulf %36, %39 : vector<16x256xf32>
    %c239_i32 = arith.constant 239 : i32
    %41 = tpu.dynamic_rotate %1 by %c239_i32 dim 1 : vector<16x256xf32>, i32 -> vector<16x256xf32>
    %c8 = arith.constant 8 : index
    %c0_19 = arith.constant 0 : index
    %c0_20 = arith.constant 0 : index
    %42 = vector.load %arg2[%c8, %c0_19, %c0_20] : memref<9x1x256xf32, #tpu.memory_space<vmem>>, vector<1x1x256xf32>
    %43 = vector.shape_cast %42 : vector<1x1x256xf32> to vector<1x256xf32>
    %44 = vector.broadcast %43 : vector<1x256xf32> to vector<16x256xf32>
    %45 = arith.mulf %41, %44 : vector<16x256xf32>
    %46 = tpu.concatenate %6, %11, %16, %21, %25, %30, %35, %40, %45 in 0 : vector<16x256xf32>, vector<16x256xf32>, vector<16x256xf32>, vector<16x256xf32>, vector<16x256xf32>, vector<16x256xf32>, vector<16x256xf32>, vector<16x256xf32>, vector<16x256xf32> -> vector<144x256xf32>
    %c0_21 = arith.constant 0 : index
    %c0_22 = arith.constant 0 : index
    %47 = vector.load %arg5[%c0_21, %c0_22] : memref<8x144xf32, #tpu.memory_space<vmem>>, vector<8x144xf32>
    %cst = arith.constant dense<0.000000e+00> : vector<8x256xf32>
    %48 = tpu.matmul %47, %46, %cst {dimension_numbers = #tpu.dot_dimension_numbers<[1], [0], [0], [1], [0, 0, 1, 1], [], []>} : vector<8x144xf32>, vector<144x256xf32>, vector<8x256xf32> -> vector<8x256xf32>
    %c0_23 = arith.constant 0 : index
    %c0_24 = arith.constant 0 : index
    %49 = vector.load %arg6[%c0_23, %c0_24] : memref<8x1xf32, #tpu.memory_space<vmem>>, vector<8x1xf32>
    %50 = vector.broadcast %49 : vector<8x1xf32> to vector<8x256xf32>
    %51 = arith.addf %48, %50 : vector<8x256xf32>
    %52 = vector.extract_strided_slice %51 {offsets = [4, 0], sizes = [2, 256], strides = [1, 1]} : vector<8x256xf32> to vector<2x256xf32>
    %53 = arith.negf %52 : vector<2x256xf32>
    %54 = math.exp %53 : vector<2x256xf32>
    %cst_25 = arith.constant 1.000000e+00 : f32
    %55 = vector.broadcast %cst_25 : f32 to vector<2x256xf32>
    %56 = arith.addf %55, %54 : vector<2x256xf32>
    %57 = arith.divf %55, %56 : vector<2x256xf32>
    %cst_26 = arith.constant dense<0.000000e+00> : vector<2xf32>
    %58 = vector.multi_reduction <add>, %57, %cst_26 [1] : vector<2x256xf32> to vector<2xf32>
    %59 = vector.shape_cast %58 : vector<2xf32> to vector<2x1xf32>
    %c0_27 = arith.constant 0 : index
    %c0_28 = arith.constant 0 : index
    %c0_29 = arith.constant 0 : index
    %60 = vector.load %arg12[%c0_27, %c0_28, %c0_29] : memref<1x2x1xf32, #tpu.memory_space<vmem>>, vector<1x2x1xf32>
    %61 = vector.shape_cast %60 : vector<1x2x1xf32> to vector<2x1xf32>
    %62 = vector.shape_cast %59 : vector<2x1xf32> to vector<1x2x1xf32>
    tpu.vector_store %arg12[%c0_27, %c0_28, %c0_29], %62 {strides = array<i32>} : memref<1x2x1xf32, #tpu.memory_space<vmem>>, vector<1x2x1xf32>,
    %cst_30 = arith.constant 5.000000e-01 : f32
    %63 = vector.broadcast %cst_30 : f32 to vector<2x256xf32>
    %64 = arith.cmpf oge, %57, %63 : vector<2x256xf32>
    %cst_31 = arith.constant 0.000000e+00 : f32
    %65 = vector.broadcast %cst_31 : f32 to vector<2x256xf32>
    %66 = arith.select %64, %57, %65 : vector<2x256xi1>, vector<2x256xf32>
    %67 = vector.extract_strided_slice %66 {offsets = [0, 0], sizes = [1, 256], strides = [1, 1]} : vector<2x256xf32> to vector<1x256xf32>
    %68 = vector.extract_strided_slice %66 {offsets = [1, 0], sizes = [1, 256], strides = [1, 1]} : vector<2x256xf32> to vector<1x256xf32>
    %cst_32 = arith.constant 0.000000e+00 : f32
    %69 = vector.broadcast %cst_32 : f32 to vector<8x256xf32>
    %70 = arith.maximumf %51, %69 : vector<8x256xf32>
    %71 = vector.broadcast %67 : vector<1x256xf32> to vector<8x256xf32>
    %72 = arith.mulf %70, %71 : vector<8x256xf32>
    %c0_33 = arith.constant 0 : index
    %c0_34 = arith.constant 0 : index
    %c0_35 = arith.constant 0 : index
    %73 = vector.load %arg3[%c0_33, %c0_34, %c0_35] : memref<9x1x256xf32, #tpu.memory_space<vmem>>, vector<1x1x256xf32>
    %74 = vector.shape_cast %73 : vector<1x1x256xf32> to vector<1x256xf32>
    %c17_i32_36 = arith.constant 17 : i32
    %75 = tpu.dynamic_rotate %72 by %c17_i32_36 dim 1 : vector<8x256xf32>, i32 -> vector<8x256xf32>
    %76 = vector.broadcast %74 : vector<1x256xf32> to vector<8x256xf32>
    %77 = arith.mulf %75, %76 : vector<8x256xf32>
    %c17_i32_37 = arith.constant 17 : i32
    %78 = tpu.dynamic_rotate %67 by %c17_i32_37 dim 1 : vector<1x256xf32>, i32 -> vector<1x256xf32>
    %79 = arith.mulf %78, %74 : vector<1x256xf32>
    %c1_38 = arith.constant 1 : index
    %c0_39 = arith.constant 0 : index
    %c0_40 = arith.constant 0 : index
    %80 = vector.load %arg3[%c1_38, %c0_39, %c0_40] : memref<9x1x256xf32, #tpu.memory_space<vmem>>, vector<1x1x256xf32>
    %81 = vector.shape_cast %80 : vector<1x1x256xf32> to vector<1x256xf32>
    %c16_i32_41 = arith.constant 16 : i32
    %82 = tpu.dynamic_rotate %72 by %c16_i32_41 dim 1 : vector<8x256xf32>, i32 -> vector<8x256xf32>
    %83 = vector.broadcast %81 : vector<1x256xf32> to vector<8x256xf32>
    %84 = arith.mulf %82, %83 : vector<8x256xf32>
    %85 = arith.addf %77, %84 : vector<8x256xf32>
    %c16_i32_42 = arith.constant 16 : i32
    %86 = tpu.dynamic_rotate %67 by %c16_i32_42 dim 1 : vector<1x256xf32>, i32 -> vector<1x256xf32>
    %87 = arith.mulf %86, %81 : vector<1x256xf32>
    %88 = arith.addf %79, %87 : vector<1x256xf32>
    %c2_43 = arith.constant 2 : index
    %c0_44 = arith.constant 0 : index
    %c0_45 = arith.constant 0 : index
    %89 = vector.load %arg3[%c2_43, %c0_44, %c0_45] : memref<9x1x256xf32, #tpu.memory_space<vmem>>, vector<1x1x256xf32>
    %90 = vector.shape_cast %89 : vector<1x1x256xf32> to vector<1x256xf32>
    %c15_i32_46 = arith.constant 15 : i32
    %91 = tpu.dynamic_rotate %72 by %c15_i32_46 dim 1 : vector<8x256xf32>, i32 -> vector<8x256xf32>
    %92 = vector.broadcast %90 : vector<1x256xf32> to vector<8x256xf32>
    %93 = arith.mulf %91, %92 : vector<8x256xf32>
    %94 = arith.addf %85, %93 : vector<8x256xf32>
    %c15_i32_47 = arith.constant 15 : i32
    %95 = tpu.dynamic_rotate %67 by %c15_i32_47 dim 1 : vector<1x256xf32>, i32 -> vector<1x256xf32>
    %96 = arith.mulf %95, %90 : vector<1x256xf32>
    %97 = arith.addf %88, %96 : vector<1x256xf32>
    %c3_48 = arith.constant 3 : index
    %c0_49 = arith.constant 0 : index
    %c0_50 = arith.constant 0 : index
    %98 = vector.load %arg3[%c3_48, %c0_49, %c0_50] : memref<9x1x256xf32, #tpu.memory_space<vmem>>, vector<1x1x256xf32>
    %99 = vector.shape_cast %98 : vector<1x1x256xf32> to vector<1x256xf32>
    %c1_i32_51 = arith.constant 1 : i32
    %100 = tpu.dynamic_rotate %72 by %c1_i32_51 dim 1 : vector<8x256xf32>, i32 -> vector<8x256xf32>
    %101 = vector.broadcast %99 : vector<1x256xf32> to vector<8x256xf32>
    %102 = arith.mulf %100, %101 : vector<8x256xf32>
    %103 = arith.addf %94, %102 : vector<8x256xf32>
    %c1_i32_52 = arith.constant 1 : i32
    %104 = tpu.dynamic_rotate %67 by %c1_i32_52 dim 1 : vector<1x256xf32>, i32 -> vector<1x256xf32>
    %105 = arith.mulf %104, %99 : vector<1x256xf32>
    %106 = arith.addf %97, %105 : vector<1x256xf32>
    %c4_53 = arith.constant 4 : index
    %c0_54 = arith.constant 0 : index
    %c0_55 = arith.constant 0 : index
    %107 = vector.load %arg3[%c4_53, %c0_54, %c0_55] : memref<9x1x256xf32, #tpu.memory_space<vmem>>, vector<1x1x256xf32>
    %108 = vector.shape_cast %107 : vector<1x1x256xf32> to vector<1x256xf32>
    %109 = vector.broadcast %108 : vector<1x256xf32> to vector<8x256xf32>
    %110 = arith.mulf %72, %109 : vector<8x256xf32>
    %111 = arith.addf %103, %110 : vector<8x256xf32>
    %112 = arith.mulf %67, %108 : vector<1x256xf32>
    %113 = arith.addf %106, %112 : vector<1x256xf32>
    %c5_56 = arith.constant 5 : index
    %c0_57 = arith.constant 0 : index
    %c0_58 = arith.constant 0 : index
    %114 = vector.load %arg3[%c5_56, %c0_57, %c0_58] : memref<9x1x256xf32, #tpu.memory_space<vmem>>, vector<1x1x256xf32>
    %115 = vector.shape_cast %114 : vector<1x1x256xf32> to vector<1x256xf32>
    %c255_i32_59 = arith.constant 255 : i32
    %116 = tpu.dynamic_rotate %72 by %c255_i32_59 dim 1 : vector<8x256xf32>, i32 -> vector<8x256xf32>
    %117 = vector.broadcast %115 : vector<1x256xf32> to vector<8x256xf32>
    %118 = arith.mulf %116, %117 : vector<8x256xf32>
    %119 = arith.addf %111, %118 : vector<8x256xf32>
    %c255_i32_60 = arith.constant 255 : i32
    %120 = tpu.dynamic_rotate %67 by %c255_i32_60 dim 1 : vector<1x256xf32>, i32 -> vector<1x256xf32>
    %121 = arith.mulf %120, %115 : vector<1x256xf32>
    %122 = arith.addf %113, %121 : vector<1x256xf32>
    %c6_61 = arith.constant 6 : index
    %c0_62 = arith.constant 0 : index
    %c0_63 = arith.constant 0 : index
    %123 = vector.load %arg3[%c6_61, %c0_62, %c0_63] : memref<9x1x256xf32, #tpu.memory_space<vmem>>, vector<1x1x256xf32>
    %124 = vector.shape_cast %123 : vector<1x1x256xf32> to vector<1x256xf32>
    %c241_i32_64 = arith.constant 241 : i32
    %125 = tpu.dynamic_rotate %72 by %c241_i32_64 dim 1 : vector<8x256xf32>, i32 -> vector<8x256xf32>
    %126 = vector.broadcast %124 : vector<1x256xf32> to vector<8x256xf32>
    %127 = arith.mulf %125, %126 : vector<8x256xf32>
    %128 = arith.addf %119, %127 : vector<8x256xf32>
    %c241_i32_65 = arith.constant 241 : i32
    %129 = tpu.dynamic_rotate %67 by %c241_i32_65 dim 1 : vector<1x256xf32>, i32 -> vector<1x256xf32>
    %130 = arith.mulf %129, %124 : vector<1x256xf32>
    %131 = arith.addf %122, %130 : vector<1x256xf32>
    %c7_66 = arith.constant 7 : index
    %c0_67 = arith.constant 0 : index
    %c0_68 = arith.constant 0 : index
    %132 = vector.load %arg3[%c7_66, %c0_67, %c0_68] : memref<9x1x256xf32, #tpu.memory_space<vmem>>, vector<1x1x256xf32>
    %133 = vector.shape_cast %132 : vector<1x1x256xf32> to vector<1x256xf32>
    %c240_i32_69 = arith.constant 240 : i32
    %134 = tpu.dynamic_rotate %72 by %c240_i32_69 dim 1 : vector<8x256xf32>, i32 -> vector<8x256xf32>
    %135 = vector.broadcast %133 : vector<1x256xf32> to vector<8x256xf32>
    %136 = arith.mulf %134, %135 : vector<8x256xf32>
    %137 = arith.addf %128, %136 : vector<8x256xf32>
    %c240_i32_70 = arith.constant 240 : i32
    %138 = tpu.dynamic_rotate %67 by %c240_i32_70 dim 1 : vector<1x256xf32>, i32 -> vector<1x256xf32>
    %139 = arith.mulf %138, %133 : vector<1x256xf32>
    %140 = arith.addf %131, %139 : vector<1x256xf32>
    %c8_71 = arith.constant 8 : index
    %c0_72 = arith.constant 0 : index
    %c0_73 = arith.constant 0 : index
    %141 = vector.load %arg3[%c8_71, %c0_72, %c0_73] : memref<9x1x256xf32, #tpu.memory_space<vmem>>, vector<1x1x256xf32>
    %142 = vector.shape_cast %141 : vector<1x1x256xf32> to vector<1x256xf32>
    %c239_i32_74 = arith.constant 239 : i32
    %143 = tpu.dynamic_rotate %72 by %c239_i32_74 dim 1 : vector<8x256xf32>, i32 -> vector<8x256xf32>
    %144 = vector.broadcast %142 : vector<1x256xf32> to vector<8x256xf32>
    %145 = arith.mulf %143, %144 : vector<8x256xf32>
    %146 = arith.addf %137, %145 : vector<8x256xf32>
    %c239_i32_75 = arith.constant 239 : i32
    %147 = tpu.dynamic_rotate %67 by %c239_i32_75 dim 1 : vector<1x256xf32>, i32 -> vector<1x256xf32>
    %148 = arith.mulf %147, %142 : vector<1x256xf32>
    %149 = arith.addf %140, %148 : vector<1x256xf32>
    %cst_76 = arith.constant 9.99999974E-6 : f32
    %150 = vector.broadcast %cst_76 : f32 to vector<1x256xf32>
    %151 = arith.addf %149, %150 : vector<1x256xf32>
    %152 = tpu.reciprocal %151 {approx = true} : vector<1x256xf32> -> vector<1x256xf32>
    %153 = vector.broadcast %152 : vector<1x256xf32> to vector<8x256xf32>
    %154 = arith.mulf %146, %153 : vector<8x256xf32>
    %155 = vector.broadcast %67 : vector<1x256xf32> to vector<8x256xf32>
    %156 = arith.mulf %155, %70 : vector<8x256xf32>
    %cst_77 = arith.constant 1.000000e+00 : f32
    %157 = vector.broadcast %cst_77 : f32 to vector<1x256xf32>
    %158 = arith.subf %157, %67 : vector<1x256xf32>
    %159 = vector.broadcast %158 : vector<1x256xf32> to vector<8x256xf32>
    %160 = arith.mulf %159, %154 : vector<8x256xf32>
    %161 = arith.addf %156, %160 : vector<8x256xf32>
    %c17_i32_78 = arith.constant 17 : i32
    %162 = tpu.dynamic_rotate %161 by %c17_i32_78 dim 1 : vector<8x256xf32>, i32 -> vector<8x256xf32>
    %c0_79 = arith.constant 0 : index
    %c0_80 = arith.constant 0 : index
    %c0_81 = arith.constant 0 : index
    %163 = vector.load %arg2[%c0_79, %c0_80, %c0_81] : memref<9x1x256xf32, #tpu.memory_space<vmem>>, vector<1x1x256xf32>
    %164 = vector.shape_cast %163 : vector<1x1x256xf32> to vector<1x256xf32>
    %165 = vector.broadcast %164 : vector<1x256xf32> to vector<8x256xf32>
    %166 = arith.mulf %162, %165 : vector<8x256xf32>
    %c16_i32_82 = arith.constant 16 : i32
    %167 = tpu.dynamic_rotate %161 by %c16_i32_82 dim 1 : vector<8x256xf32>, i32 -> vector<8x256xf32>
    %c1_83 = arith.constant 1 : index
    %c0_84 = arith.constant 0 : index
    %c0_85 = arith.constant 0 : index
    %168 = vector.load %arg2[%c1_83, %c0_84, %c0_85] : memref<9x1x256xf32, #tpu.memory_space<vmem>>, vector<1x1x256xf32>
    %169 = vector.shape_cast %168 : vector<1x1x256xf32> to vector<1x256xf32>
    %170 = vector.broadcast %169 : vector<1x256xf32> to vector<8x256xf32>
    %171 = arith.mulf %167, %170 : vector<8x256xf32>
    %c15_i32_86 = arith.constant 15 : i32
    %172 = tpu.dynamic_rotate %161 by %c15_i32_86 dim 1 : vector<8x256xf32>, i32 -> vector<8x256xf32>
    %c2_87 = arith.constant 2 : index
    %c0_88 = arith.constant 0 : index
    %c0_89 = arith.constant 0 : index
    %173 = vector.load %arg2[%c2_87, %c0_88, %c0_89] : memref<9x1x256xf32, #tpu.memory_space<vmem>>, vector<1x1x256xf32>
    %174 = vector.shape_cast %173 : vector<1x1x256xf32> to vector<1x256xf32>
    %175 = vector.broadcast %174 : vector<1x256xf32> to vector<8x256xf32>
    %176 = arith.mulf %172, %175 : vector<8x256xf32>
    %c1_i32_90 = arith.constant 1 : i32
    %177 = tpu.dynamic_rotate %161 by %c1_i32_90 dim 1 : vector<8x256xf32>, i32 -> vector<8x256xf32>
    %c3_91 = arith.constant 3 : index
    %c0_92 = arith.constant 0 : index
    %c0_93 = arith.constant 0 : index
    %178 = vector.load %arg2[%c3_91, %c0_92, %c0_93] : memref<9x1x256xf32, #tpu.memory_space<vmem>>, vector<1x1x256xf32>
    %179 = vector.shape_cast %178 : vector<1x1x256xf32> to vector<1x256xf32>
    %180 = vector.broadcast %179 : vector<1x256xf32> to vector<8x256xf32>
    %181 = arith.mulf %177, %180 : vector<8x256xf32>
    %c4_94 = arith.constant 4 : index
    %c0_95 = arith.constant 0 : index
    %c0_96 = arith.constant 0 : index
    %182 = vector.load %arg2[%c4_94, %c0_95, %c0_96] : memref<9x1x256xf32, #tpu.memory_space<vmem>>, vector<1x1x256xf32>
    %183 = vector.shape_cast %182 : vector<1x1x256xf32> to vector<1x256xf32>
    %184 = vector.broadcast %183 : vector<1x256xf32> to vector<8x256xf32>
    %185 = arith.mulf %161, %184 : vector<8x256xf32>
    %c255_i32_97 = arith.constant 255 : i32
    %186 = tpu.dynamic_rotate %161 by %c255_i32_97 dim 1 : vector<8x256xf32>, i32 -> vector<8x256xf32>
    %c5_98 = arith.constant 5 : index
    %c0_99 = arith.constant 0 : index
    %c0_100 = arith.constant 0 : index
    %187 = vector.load %arg2[%c5_98, %c0_99, %c0_100] : memref<9x1x256xf32, #tpu.memory_space<vmem>>, vector<1x1x256xf32>
    %188 = vector.shape_cast %187 : vector<1x1x256xf32> to vector<1x256xf32>
    %189 = vector.broadcast %188 : vector<1x256xf32> to vector<8x256xf32>
    %190 = arith.mulf %186, %189 : vector<8x256xf32>
    %c241_i32_101 = arith.constant 241 : i32
    %191 = tpu.dynamic_rotate %161 by %c241_i32_101 dim 1 : vector<8x256xf32>, i32 -> vector<8x256xf32>
    %c6_102 = arith.constant 6 : index
    %c0_103 = arith.constant 0 : index
    %c0_104 = arith.constant 0 : index
    %192 = vector.load %arg2[%c6_102, %c0_103, %c0_104] : memref<9x1x256xf32, #tpu.memory_space<vmem>>, vector<1x1x256xf32>
    %193 = vector.shape_cast %192 : vector<1x1x256xf32> to vector<1x256xf32>
    %194 = vector.broadcast %193 : vector<1x256xf32> to vector<8x256xf32>
    %195 = arith.mulf %191, %194 : vector<8x256xf32>
    %c240_i32_105 = arith.constant 240 : i32
    %196 = tpu.dynamic_rotate %161 by %c240_i32_105 dim 1 : vector<8x256xf32>, i32 -> vector<8x256xf32>
    %c7_106 = arith.constant 7 : index
    %c0_107 = arith.constant 0 : index
    %c0_108 = arith.constant 0 : index
    %197 = vector.load %arg2[%c7_106, %c0_107, %c0_108] : memref<9x1x256xf32, #tpu.memory_space<vmem>>, vector<1x1x256xf32>
    %198 = vector.shape_cast %197 : vector<1x1x256xf32> to vector<1x256xf32>
    %199 = vector.broadcast %198 : vector<1x256xf32> to vector<8x256xf32>
    %200 = arith.mulf %196, %199 : vector<8x256xf32>
    %c239_i32_109 = arith.constant 239 : i32
    %201 = tpu.dynamic_rotate %161 by %c239_i32_109 dim 1 : vector<8x256xf32>, i32 -> vector<8x256xf32>
    %c8_110 = arith.constant 8 : index
    %c0_111 = arith.constant 0 : index
    %c0_112 = arith.constant 0 : index
    %202 = vector.load %arg2[%c8_110, %c0_111, %c0_112] : memref<9x1x256xf32, #tpu.memory_space<vmem>>, vector<1x1x256xf32>
    %203 = vector.shape_cast %202 : vector<1x1x256xf32> to vector<1x256xf32>
    %204 = vector.broadcast %203 : vector<1x256xf32> to vector<8x256xf32>
    %205 = arith.mulf %201, %204 : vector<8x256xf32>
    %206 = tpu.concatenate %166, %171, %176, %181, %185, %190, %195, %200, %205 in 0 : vector<8x256xf32>, vector<8x256xf32>, vector<8x256xf32>, vector<8x256xf32>, vector<8x256xf32>, vector<8x256xf32>, vector<8x256xf32>, vector<8x256xf32>, vector<8x256xf32> -> vector<72x256xf32>
    %207 = arith.truncf %206 : vector<72x256xf32> to vector<72x256xbf16>
    %c0_113 = arith.constant 0 : index
    %c0_114 = arith.constant 0 : index
    %208 = vector.load %arg7[%c0_113, %c0_114] : memref<4x72xbf16, #tpu.memory_space<vmem>>, vector<4x72xbf16>
    %cst_115 = arith.constant dense<0.000000e+00> : vector<4x256xf32>
    %209 = tpu.matmul %208, %207, %cst_115 {dimension_numbers = #tpu.dot_dimension_numbers<[1], [0], [0], [1], [0, 0, 1, 1], [], []>} : vector<4x72xbf16>, vector<72x256xbf16>, vector<4x256xf32> -> vector<4x256xf32>
    %c0_116 = arith.constant 0 : index
    %c0_117 = arith.constant 0 : index
    %210 = vector.load %arg8[%c0_116, %c0_117] : memref<4x1xf32, #tpu.memory_space<vmem>>, vector<4x1xf32>
    %211 = vector.broadcast %210 : vector<4x1xf32> to vector<4x256xf32>
    %212 = arith.addf %209, %211 : vector<4x256xf32>
    %cst_118 = arith.constant 0.000000e+00 : f32
    %213 = vector.broadcast %cst_118 : f32 to vector<4x256xf32>
    %214 = arith.maximumf %212, %213 : vector<4x256xf32>
    %215 = vector.broadcast %68 : vector<1x256xf32> to vector<4x256xf32>
    %216 = arith.mulf %214, %215 : vector<4x256xf32>
    %c0_119 = arith.constant 0 : index
    %c0_120 = arith.constant 0 : index
    %c0_121 = arith.constant 0 : index
    %217 = vector.load %arg4[%c0_119, %c0_120, %c0_121] : memref<9x1x256xf32, #tpu.memory_space<vmem>>, vector<1x1x256xf32>
    %218 = vector.shape_cast %217 : vector<1x1x256xf32> to vector<1x256xf32>
    %c17_i32_122 = arith.constant 17 : i32
    %219 = tpu.dynamic_rotate %216 by %c17_i32_122 dim 1 : vector<4x256xf32>, i32 -> vector<4x256xf32>
    %220 = vector.broadcast %218 : vector<1x256xf32> to vector<4x256xf32>
    %221 = arith.mulf %219, %220 : vector<4x256xf32>
    %c17_i32_123 = arith.constant 17 : i32
    %222 = tpu.dynamic_rotate %68 by %c17_i32_123 dim 1 : vector<1x256xf32>, i32 -> vector<1x256xf32>
    %223 = arith.mulf %222, %218 : vector<1x256xf32>
    %c1_124 = arith.constant 1 : index
    %c0_125 = arith.constant 0 : index
    %c0_126 = arith.constant 0 : index
    %224 = vector.load %arg4[%c1_124, %c0_125, %c0_126] : memref<9x1x256xf32, #tpu.memory_space<vmem>>, vector<1x1x256xf32>
    %225 = vector.shape_cast %224 : vector<1x1x256xf32> to vector<1x256xf32>
    %c16_i32_127 = arith.constant 16 : i32
    %226 = tpu.dynamic_rotate %216 by %c16_i32_127 dim 1 : vector<4x256xf32>, i32 -> vector<4x256xf32>
    %227 = vector.broadcast %225 : vector<1x256xf32> to vector<4x256xf32>
    %228 = arith.mulf %226, %227 : vector<4x256xf32>
    %229 = arith.addf %221, %228 : vector<4x256xf32>
    %c16_i32_128 = arith.constant 16 : i32
    %230 = tpu.dynamic_rotate %68 by %c16_i32_128 dim 1 : vector<1x256xf32>, i32 -> vector<1x256xf32>
    %231 = arith.mulf %230, %225 : vector<1x256xf32>
    %232 = arith.addf %223, %231 : vector<1x256xf32>
    %c2_129 = arith.constant 2 : index
    %c0_130 = arith.constant 0 : index
    %c0_131 = arith.constant 0 : index
    %233 = vector.load %arg4[%c2_129, %c0_130, %c0_131] : memref<9x1x256xf32, #tpu.memory_space<vmem>>, vector<1x1x256xf32>
    %234 = vector.shape_cast %233 : vector<1x1x256xf32> to vector<1x256xf32>
    %c15_i32_132 = arith.constant 15 : i32
    %235 = tpu.dynamic_rotate %216 by %c15_i32_132 dim 1 : vector<4x256xf32>, i32 -> vector<4x256xf32>
    %236 = vector.broadcast %234 : vector<1x256xf32> to vector<4x256xf32>
    %237 = arith.mulf %235, %236 : vector<4x256xf32>
    %238 = arith.addf %229, %237 : vector<4x256xf32>
    %c15_i32_133 = arith.constant 15 : i32
    %239 = tpu.dynamic_rotate %68 by %c15_i32_133 dim 1 : vector<1x256xf32>, i32 -> vector<1x256xf32>
    %240 = arith.mulf %239, %234 : vector<1x256xf32>
    %241 = arith.addf %232, %240 : vector<1x256xf32>
    %c3_134 = arith.constant 3 : index
    %c0_135 = arith.constant 0 : index
    %c0_136 = arith.constant 0 : index
    %242 = vector.load %arg4[%c3_134, %c0_135, %c0_136] : memref<9x1x256xf32, #tpu.memory_space<vmem>>, vector<1x1x256xf32>
    %243 = vector.shape_cast %242 : vector<1x1x256xf32> to vector<1x256xf32>
    %c1_i32_137 = arith.constant 1 : i32
    %244 = tpu.dynamic_rotate %216 by %c1_i32_137 dim 1 : vector<4x256xf32>, i32 -> vector<4x256xf32>
    %245 = vector.broadcast %243 : vector<1x256xf32> to vector<4x256xf32>
    %246 = arith.mulf %244, %245 : vector<4x256xf32>
    %247 = arith.addf %238, %246 : vector<4x256xf32>
    %c1_i32_138 = arith.constant 1 : i32
    %248 = tpu.dynamic_rotate %68 by %c1_i32_138 dim 1 : vector<1x256xf32>, i32 -> vector<1x256xf32>
    %249 = arith.mulf %248, %243 : vector<1x256xf32>
    %250 = arith.addf %241, %249 : vector<1x256xf32>
    %c4_139 = arith.constant 4 : index
    %c0_140 = arith.constant 0 : index
    %c0_141 = arith.constant 0 : index
    %251 = vector.load %arg4[%c4_139, %c0_140, %c0_141] : memref<9x1x256xf32, #tpu.memory_space<vmem>>, vector<1x1x256xf32>
    %252 = vector.shape_cast %251 : vector<1x1x256xf32> to vector<1x256xf32>
    %253 = vector.broadcast %252 : vector<1x256xf32> to vector<4x256xf32>
    %254 = arith.mulf %216, %253 : vector<4x256xf32>
    %255 = arith.addf %247, %254 : vector<4x256xf32>
    %256 = arith.mulf %68, %252 : vector<1x256xf32>
    %257 = arith.addf %250, %256 : vector<1x256xf32>
    %c5_142 = arith.constant 5 : index
    %c0_143 = arith.constant 0 : index
    %c0_144 = arith.constant 0 : index
    %258 = vector.load %arg4[%c5_142, %c0_143, %c0_144] : memref<9x1x256xf32, #tpu.memory_space<vmem>>, vector<1x1x256xf32>
    %259 = vector.shape_cast %258 : vector<1x1x256xf32> to vector<1x256xf32>
    %c255_i32_145 = arith.constant 255 : i32
    %260 = tpu.dynamic_rotate %216 by %c255_i32_145 dim 1 : vector<4x256xf32>, i32 -> vector<4x256xf32>
    %261 = vector.broadcast %259 : vector<1x256xf32> to vector<4x256xf32>
    %262 = arith.mulf %260, %261 : vector<4x256xf32>
    %263 = arith.addf %255, %262 : vector<4x256xf32>
    %c255_i32_146 = arith.constant 255 : i32
    %264 = tpu.dynamic_rotate %68 by %c255_i32_146 dim 1 : vector<1x256xf32>, i32 -> vector<1x256xf32>
    %265 = arith.mulf %264, %259 : vector<1x256xf32>
    %266 = arith.addf %257, %265 : vector<1x256xf32>
    %c6_147 = arith.constant 6 : index
    %c0_148 = arith.constant 0 : index
    %c0_149 = arith.constant 0 : index
    %267 = vector.load %arg4[%c6_147, %c0_148, %c0_149] : memref<9x1x256xf32, #tpu.memory_space<vmem>>, vector<1x1x256xf32>
    %268 = vector.shape_cast %267 : vector<1x1x256xf32> to vector<1x256xf32>
    %c241_i32_150 = arith.constant 241 : i32
    %269 = tpu.dynamic_rotate %216 by %c241_i32_150 dim 1 : vector<4x256xf32>, i32 -> vector<4x256xf32>
    %270 = vector.broadcast %268 : vector<1x256xf32> to vector<4x256xf32>
    %271 = arith.mulf %269, %270 : vector<4x256xf32>
    %272 = arith.addf %263, %271 : vector<4x256xf32>
    %c241_i32_151 = arith.constant 241 : i32
    %273 = tpu.dynamic_rotate %68 by %c241_i32_151 dim 1 : vector<1x256xf32>, i32 -> vector<1x256xf32>
    %274 = arith.mulf %273, %268 : vector<1x256xf32>
    %275 = arith.addf %266, %274 : vector<1x256xf32>
    %c7_152 = arith.constant 7 : index
    %c0_153 = arith.constant 0 : index
    %c0_154 = arith.constant 0 : index
    %276 = vector.load %arg4[%c7_152, %c0_153, %c0_154] : memref<9x1x256xf32, #tpu.memory_space<vmem>>, vector<1x1x256xf32>
    %277 = vector.shape_cast %276 : vector<1x1x256xf32> to vector<1x256xf32>
    %c240_i32_155 = arith.constant 240 : i32
    %278 = tpu.dynamic_rotate %216 by %c240_i32_155 dim 1 : vector<4x256xf32>, i32 -> vector<4x256xf32>
    %279 = vector.broadcast %277 : vector<1x256xf32> to vector<4x256xf32>
    %280 = arith.mulf %278, %279 : vector<4x256xf32>
    %281 = arith.addf %272, %280 : vector<4x256xf32>
    %c240_i32_156 = arith.constant 240 : i32
    %282 = tpu.dynamic_rotate %68 by %c240_i32_156 dim 1 : vector<1x256xf32>, i32 -> vector<1x256xf32>
    %283 = arith.mulf %282, %277 : vector<1x256xf32>
    %284 = arith.addf %275, %283 : vector<1x256xf32>
    %c8_157 = arith.constant 8 : index
    %c0_158 = arith.constant 0 : index
    %c0_159 = arith.constant 0 : index
    %285 = vector.load %arg4[%c8_157, %c0_158, %c0_159] : memref<9x1x256xf32, #tpu.memory_space<vmem>>, vector<1x1x256xf32>
    %286 = vector.shape_cast %285 : vector<1x1x256xf32> to vector<1x256xf32>
    %c239_i32_160 = arith.constant 239 : i32
    %287 = tpu.dynamic_rotate %216 by %c239_i32_160 dim 1 : vector<4x256xf32>, i32 -> vector<4x256xf32>
    %288 = vector.broadcast %286 : vector<1x256xf32> to vector<4x256xf32>
    %289 = arith.mulf %287, %288 : vector<4x256xf32>
    %290 = arith.addf %281, %289 : vector<4x256xf32>
    %c239_i32_161 = arith.constant 239 : i32
    %291 = tpu.dynamic_rotate %68 by %c239_i32_161 dim 1 : vector<1x256xf32>, i32 -> vector<1x256xf32>
    %292 = arith.mulf %291, %286 : vector<1x256xf32>
    %293 = arith.addf %284, %292 : vector<1x256xf32>
    %cst_162 = arith.constant 9.99999974E-6 : f32
    %294 = vector.broadcast %cst_162 : f32 to vector<1x256xf32>
    %295 = arith.addf %293, %294 : vector<1x256xf32>
    %296 = tpu.reciprocal %295 {approx = true} : vector<1x256xf32> -> vector<1x256xf32>
    %297 = vector.broadcast %296 : vector<1x256xf32> to vector<4x256xf32>
    %298 = arith.mulf %290, %297 : vector<4x256xf32>
    %299 = vector.broadcast %68 : vector<1x256xf32> to vector<4x256xf32>
    %300 = arith.mulf %299, %214 : vector<4x256xf32>
    %cst_163 = arith.constant 1.000000e+00 : f32
    %301 = vector.broadcast %cst_163 : f32 to vector<1x256xf32>
    %302 = arith.subf %301, %68 : vector<1x256xf32>
    %303 = vector.broadcast %302 : vector<1x256xf32> to vector<4x256xf32>
    %304 = arith.mulf %303, %298 : vector<4x256xf32>
    %305 = arith.addf %300, %304 : vector<4x256xf32>
    %c0_164 = arith.constant 0 : index
    %c0_165 = arith.constant 0 : index
    %306 = vector.load %arg9[%c0_164, %c0_165] : memref<16x4xbf16, #tpu.memory_space<vmem>>, vector<16x4xbf16>
    %307 = arith.truncf %305 : vector<4x256xf32> to vector<4x256xbf16>
    %cst_166 = arith.constant dense<0.000000e+00> : vector<16x256xf32>
    %308 = tpu.matmul %306, %307, %cst_166 {dimension_numbers = #tpu.dot_dimension_numbers<[1], [0], [0], [1], [0, 0, 1, 1], [], []>} : vector<16x4xbf16>, vector<4x256xbf16>, vector<16x256xf32> -> vector<16x256xf32>
    %c0_167 = arith.constant 0 : index
    %c0_168 = arith.constant 0 : index
    %309 = vector.load %arg10[%c0_167, %c0_168] : memref<16x1xf32, #tpu.memory_space<vmem>>, vector<16x1xf32>
    %310 = vector.broadcast %309 : vector<16x1xf32> to vector<16x256xf32>
    %311 = arith.addf %308, %310 : vector<16x256xf32>
    %312 = arith.addf %311, %1 : vector<16x256xf32>
    %cst_169 = arith.constant 0.000000e+00 : f32
    %313 = vector.broadcast %cst_169 : f32 to vector<16x256xf32>
    %314 = arith.maximumf %312, %313 : vector<16x256xf32>
    %c0_170 = arith.constant 0 : index
    %c0_171 = arith.constant 0 : index
    %c0_172 = arith.constant 0 : index
    %315 = vector.load %arg11[%c0_170, %c0_171, %c0_172] : memref<1x16x256xf32, #tpu.memory_space<vmem>>, vector<1x16x256xf32>
    %316 = vector.shape_cast %315 : vector<1x16x256xf32> to vector<16x256xf32>
    %317 = vector.shape_cast %314 : vector<16x256xf32> to vector<1x16x256xf32>
    tpu.vector_store %arg11[%c0_170, %c0_171, %c0_172], %317 {strides = array<i32>} : memref<1x16x256xf32, #tpu.memory_space<vmem>>, vector<1x16x256xf32>,
    return
  }
  func.func @transform_0(%arg0: i32) -> (i32, i32, i32) {
    %c0_i32 = arith.constant 0 : i32
    %c0_i32_0 = arith.constant 0 : i32
    %c0_i32_1 = arith.constant 0 : i32
    return %arg0, %c0_i32, %c0_i32_0 : i32, i32, i32
  }
  func.func @transform_1(%arg0: i32) -> (i32, i32, i32) {
    %c0_i32 = arith.constant 0 : i32
    %c0_i32_0 = arith.constant 0 : i32
    %c0_i32_1 = arith.constant 0 : i32
    %c0_i32_2 = arith.constant 0 : i32
    return %c0_i32, %c0_i32_0, %c0_i32_1 : i32, i32, i32
  }
  func.func @transform_2(%arg0: i32) -> (i32, i32, i32) {
    %c0_i32 = arith.constant 0 : i32
    %c0_i32_0 = arith.constant 0 : i32
    %c0_i32_1 = arith.constant 0 : i32
    %c0_i32_2 = arith.constant 0 : i32
    return %c0_i32, %c0_i32_0, %c0_i32_1 : i32, i32, i32
  }
  func.func @transform_3(%arg0: i32) -> (i32, i32, i32) {
    %c0_i32 = arith.constant 0 : i32
    %c0_i32_0 = arith.constant 0 : i32
    %c0_i32_1 = arith.constant 0 : i32
    %c0_i32_2 = arith.constant 0 : i32
    return %c0_i32, %c0_i32_0, %c0_i32_1 : i32, i32, i32
  }
  func.func @transform_4(%arg0: i32) -> (i32, i32) {
    %c0_i32 = arith.constant 0 : i32
    %c0_i32_0 = arith.constant 0 : i32
    %c0_i32_1 = arith.constant 0 : i32
    return %c0_i32, %c0_i32_0 : i32, i32
  }
  func.func @transform_5(%arg0: i32) -> (i32, i32) {
    %c0_i32 = arith.constant 0 : i32
    %c0_i32_0 = arith.constant 0 : i32
    %c0_i32_1 = arith.constant 0 : i32
    return %c0_i32, %c0_i32_0 : i32, i32
  }
  func.func @transform_6(%arg0: i32) -> (i32, i32) {
    %c0_i32 = arith.constant 0 : i32
    %c0_i32_0 = arith.constant 0 : i32
    %c0_i32_1 = arith.constant 0 : i32
    return %c0_i32, %c0_i32_0 : i32, i32
  }
  func.func @transform_7(%arg0: i32) -> (i32, i32) {
    %c0_i32 = arith.constant 0 : i32
    %c0_i32_0 = arith.constant 0 : i32
    %c0_i32_1 = arith.constant 0 : i32
    return %c0_i32, %c0_i32_0 : i32, i32
  }
  func.func @transform_8(%arg0: i32) -> (i32, i32) {
    %c0_i32 = arith.constant 0 : i32
    %c0_i32_0 = arith.constant 0 : i32
    %c0_i32_1 = arith.constant 0 : i32
    return %c0_i32, %c0_i32_0 : i32, i32
  }
  func.func @transform_9(%arg0: i32) -> (i32, i32) {
    %c0_i32 = arith.constant 0 : i32
    %c0_i32_0 = arith.constant 0 : i32
    %c0_i32_1 = arith.constant 0 : i32
    return %c0_i32, %c0_i32_0 : i32, i32
  }
  func.func @transform_10(%arg0: i32) -> (i32, i32, i32) {
    %c0_i32 = arith.constant 0 : i32
    %c0_i32_0 = arith.constant 0 : i32
    %c0_i32_1 = arith.constant 0 : i32
    return %arg0, %c0_i32, %c0_i32_0 : i32, i32, i32
  }
  func.func @transform_11(%arg0: i32) -> (i32, i32, i32) {
    %c0_i32 = arith.constant 0 : i32
    %c0_i32_0 = arith.constant 0 : i32
    %c0_i32_1 = arith.constant 0 : i32
    return %arg0, %c0_i32, %c0_i32_0 : i32, i32, i32
  }
}

</mosaic_0001>

<llo_original>
// kernel: bottleneck_forward.1
$region0: #{bottleneck_forward.1}
  #allocation0 [shape = 'u32[]', space=smem, size = 0x4, offset = 0x4, fixed_abs, tag = 'smem constant byte address 0x4 - core index']
  #allocation1 [shape = 'u32[144,128]{1,0:T(1,128)}', space=vmem, size = 0x12000, scoped, tag = 'internal scratch']
  %s0 = inlined_call_operand.vmem [shape: f32[2,16,256], index: 0, kind: input, shape index: {}]
  %s1 = inlined_call_operand.vmem [shape: f32[9,1,256], index: 1, kind: input, shape index: {}]
  %s2 = inlined_call_operand.vmem [shape: f32[9,1,256], index: 2, kind: input, shape index: {}]
  %s3 = inlined_call_operand.vmem [shape: f32[9,1,256], index: 3, kind: input, shape index: {}]
  %s4 = inlined_call_operand.vmem [shape: f32[8,144], index: 4, kind: input, shape index: {}]
  %s5 = inlined_call_operand.vmem [shape: f32[8,1], index: 5, kind: input, shape index: {}]
  %s6 = inlined_call_operand.vmem [shape: bf16[4,72], index: 6, kind: input, shape index: {}]
  %s7 = inlined_call_operand.vmem [shape: f32[4,1], index: 7, kind: input, shape index: {}]
  %s8 = inlined_call_operand.vmem [shape: bf16[16,4], index: 8, kind: input, shape index: {}]
  %s9 = inlined_call_operand.vmem [shape: f32[16,1], index: 9, kind: input, shape index: {}]
  %s10 = inlined_call_operand.vmem [shape: f32[2,16,256], index: 10, kind: output, shape index: {0}]
  %s11 = inlined_call_operand.vmem [shape: f32[2,2,1], index: 11, kind: output, shape index: {1}]
  %12 = xla_tuple %s10, %s11
  %s13 = sld [smem:[#allocation0]]
  $region81: #{bottleneck_forward.1} parent=0
    _
  %s15 = ssub.s32 1, %s13
  %s16 = scalar_select 0, %s15, %s13
  loop: start=0, step=1, limit=4
  $region2: #{bottleneck_forward.1} parent=0 // loop_pre_header
    _
  $region3: #{bottleneck_forward.1} parent=0 // loop_header
    %s18 = sphi 0, %s22
    %p19 = scmp.ge.s32.totalorder %s18, 4
    %s28 = sphi 0, %s30
    %s31 = sphi 0, %s28
    %s32 = sphi 0, %s31
    %s48 = sphi 0, %s32
    %s52 = sphi 0, %s52
    %s54 = sphi 0, %s52
    %s55 = sphi 0, %s54
    %s69 = sphi 0, %s55
    %s73 = sphi 0, %s73
    %s75 = sphi 0, %s73
    %s76 = sphi 0, %s75
    %s90 = sphi 0, %s76
    %s94 = sphi 0, %s94
    %s96 = sphi 0, %s94
    %s97 = sphi 0, %s96
    %s111 = sphi 0, %s97
    %s115 = sphi 0, %s115
    %s117 = sphi 0, %s115
    %s118 = sphi 0, %s117
    %s132 = sphi 0, %s118
    %s136 = sphi 0, %s136
    %s138 = sphi 0, %s136
    %s139 = sphi 0, %s138
    %s153 = sphi 0, %s139
    %s157 = sphi 0, %s157
    %s159 = sphi 0, %s157
    %s160 = sphi 0, %s159
    %s174 = sphi 0, %s160
    %s178 = sphi 0, %s178
    %s180 = sphi 0, %s178
    %s181 = sphi 0, %s180
    %s195 = sphi 0, %s181
    %s199 = sphi 0, %s199
    %s201 = sphi 0, %s199
    %s202 = sphi 0, %s201
    %s216 = sphi 0, %s202
    %s220 = sphi 0, %s220
    %s222 = sphi 0, %s220
    %s223 = sphi 0, %s222
    %s237 = sphi 0, %s223
    %s243 = sphi 0, %s245
    %s246 = sphi 0, %s243
    %s247 = sphi 0, %s246
    %s263 = sphi 0, %s247
    %s269 = sphi 0, %s271
    %s272 = sphi 0, %s269
    %s273 = sphi 0, %s272
    %s289 = sphi 0, %s273
  $region4: #{bottleneck_forward.1} parent=0 // loop_header_branch
    %21 = sbr.rel (%p19) target = $region8
  $region5: #{bottleneck_forward.1} parent=0 // loop_body
    %s23 = ssub.s32 %s18, 1
    %s24 = ssub.s32 %s18, 2
    %s25 = sadd.s32 %s18, 1
    %s26 = ssub.s32 %s18, %s25
    %p27 = scmp.eq.s32.totalorder %s26, 0
    %s29 = sadd.s32 %s28, 1
    %s30 = scalar_select %p27, %s28, %s29
    %p33 = pneg %p27
    %p34 = scmp.eq.s32.totalorder %s18, 1
    %p35 = por %p33, %p34
    %p36 = scmp.ne.s32.totalorder %s28, %s31
    %p37 = scmp.eq.s32.totalorder %s18, 0
    %p38 = por %p36, %p37
    %p39 = scmp.ne.s32.totalorder %s28, %s31
    %p40 = scmp.eq.s32.totalorder %s23, 1
    %p41 = por %p39, %p40
    %p42 = scmp.ne.s32.totalorder %s31, %s32
    %p43 = scmp.eq.s32.totalorder %s23, 0
    %p44 = por %p42, %p43
    %p45 = scmp.ne.s32.totalorder %s31, %s32
    %p46 = scmp.eq.s32.totalorder %s24, 1
    %p47 = por %p45, %p46
    %p49 = scmp.ne.s32.totalorder %s32, %s48
    %p50 = scmp.eq.s32.totalorder %s24, 0
    %p51 = por %p49, %p50
    %s53 = sadd.s32 %s52, 1
    %p56 = scmp.eq.s32.totalorder %s18, 1
    %p57 = scmp.ne.s32.totalorder %s52, %s54
    %p58 = scmp.eq.s32.totalorder %s18, 0
    %p59 = por %p57, %p58
    %p60 = scmp.ne.s32.totalorder %s52, %s54
    %p61 = scmp.eq.s32.totalorder %s23, 1
    %p62 = por %p60, %p61
    %p63 = scmp.ne.s32.totalorder %s54, %s55
    %p64 = scmp.eq.s32.totalorder %s23, 0
    %p65 = por %p63, %p64
    %p66 = scmp.ne.s32.totalorder %s54, %s55
    %p67 = scmp.eq.s32.totalorder %s24, 1
    %p68 = por %p66, %p67
    %p70 = scmp.ne.s32.totalorder %s55, %s69
    %p71 = scmp.eq.s32.totalorder %s24, 0
    %p72 = por %p70, %p71
    %s74 = sadd.s32 %s73, 1
    %p77 = scmp.eq.s32.totalorder %s18, 1
    %p78 = scmp.ne.s32.totalorder %s73, %s75
    %p79 = scmp.eq.s32.totalorder %s18, 0
    %p80 = por %p78, %p79
    %p81 = scmp.ne.s32.totalorder %s73, %s75
    %p82 = scmp.eq.s32.totalorder %s23, 1
    %p83 = por %p81, %p82
    %p84 = scmp.ne.s32.totalorder %s75, %s76
    %p85 = scmp.eq.s32.totalorder %s23, 0
    %p86 = por %p84, %p85
    %p87 = scmp.ne.s32.totalorder %s75, %s76
    %p88 = scmp.eq.s32.totalorder %s24, 1
    %p89 = por %p87, %p88
    %p91 = scmp.ne.s32.totalorder %s76, %s90
    %p92 = scmp.eq.s32.totalorder %s24, 0
    %p93 = por %p91, %p92
    %s95 = sadd.s32 %s94, 1
    %p98 = scmp.eq.s32.totalorder %s18, 1
    %p99 = scmp.ne.s32.totalorder %s94, %s96
    %p100 = scmp.eq.s32.totalorder %s18, 0
    %p101 = por %p99, %p100
    %p102 = scmp.ne.s32.totalorder %s94, %s96
    %p103 = scmp.eq.s32.totalorder %s23, 1
    %p104 = por %p102, %p103
    %p105 = scmp.ne.s32.totalorder %s96, %s97
    %p106 = scmp.eq.s32.totalorder %s23, 0
    %p107 = por %p105, %p106
    %p108 = scmp.ne.s32.totalorder %s96, %s97
    %p109 = scmp.eq.s32.totalorder %s24, 1
    %p110 = por %p108, %p109
    %p112 = scmp.ne.s32.totalorder %s97, %s111
    %p113 = scmp.eq.s32.totalorder %s24, 0
    %p114 = por %p112, %p113
    %s116 = sadd.s32 %s115, 1
    %p119 = scmp.eq.s32.totalorder %s18, 1
    %p120 = scmp.ne.s32.totalorder %s115, %s117
    %p121 = scmp.eq.s32.totalorder %s18, 0
    %p122 = por %p120, %p121
    %p123 = scmp.ne.s32.totalorder %s115, %s117
    %p124 = scmp.eq.s32.totalorder %s23, 1
    %p125 = por %p123, %p124
    %p126 = scmp.ne.s32.totalorder %s117, %s118
    %p127 = scmp.eq.s32.totalorder %s23, 0
    %p128 = por %p126, %p127
    %p129 = scmp.ne.s32.totalorder %s117, %s118
    %p130 = scmp.eq.s32.totalorder %s24, 1
    %p131 = por %p129, %p130
    %p133 = scmp.ne.s32.totalorder %s118, %s132
    %p134 = scmp.eq.s32.totalorder %s24, 0
    %p135 = por %p133, %p134
    %s137 = sadd.s32 %s136, 1
    %p140 = scmp.eq.s32.totalorder %s18, 1
    %p141 = scmp.ne.s32.totalorder %s136, %s138
    %p142 = scmp.eq.s32.totalorder %s18, 0
    %p143 = por %p141, %p142
    %p144 = scmp.ne.s32.totalorder %s136, %s138
    %p145 = scmp.eq.s32.totalorder %s23, 1
    %p146 = por %p144, %p145
    %p147 = scmp.ne.s32.totalorder %s138, %s139
    %p148 = scmp.eq.s32.totalorder %s23, 0
    %p149 = por %p147, %p148
    %p150 = scmp.ne.s32.totalorder %s138, %s139
    %p151 = scmp.eq.s32.totalorder %s24, 1
    %p152 = por %p150, %p151
    %p154 = scmp.ne.s32.totalorder %s139, %s153
    %p155 = scmp.eq.s32.totalorder %s24, 0
    %p156 = por %p154, %p155
    %s158 = sadd.s32 %s157, 1
    %p161 = scmp.eq.s32.totalorder %s18, 1
    %p162 = scmp.ne.s32.totalorder %s157, %s159
    %p163 = scmp.eq.s32.totalorder %s18, 0
    %p164 = por %p162, %p163
    %p165 = scmp.ne.s32.totalorder %s157, %s159
    %p166 = scmp.eq.s32.totalorder %s23, 1
    %p167 = por %p165, %p166
    %p168 = scmp.ne.s32.totalorder %s159, %s160
    %p169 = scmp.eq.s32.totalorder %s23, 0
    %p170 = por %p168, %p169
    %p171 = scmp.ne.s32.totalorder %s159, %s160
    %p172 = scmp.eq.s32.totalorder %s24, 1
    %p173 = por %p171, %p172
    %p175 = scmp.ne.s32.totalorder %s160, %s174
    %p176 = scmp.eq.s32.totalorder %s24, 0
    %p177 = por %p175, %p176
    %s179 = sadd.s32 %s178, 1
    %p182 = scmp.eq.s32.totalorder %s18, 1
    %p183 = scmp.ne.s32.totalorder %s178, %s180
    %p184 = scmp.eq.s32.totalorder %s18, 0
    %p185 = por %p183, %p184
    %p186 = scmp.ne.s32.totalorder %s178, %s180
    %p187 = scmp.eq.s32.totalorder %s23, 1
    %p188 = por %p186, %p187
    %p189 = scmp.ne.s32.totalorder %s180, %s181
    %p190 = scmp.eq.s32.totalorder %s23, 0
    %p191 = por %p189, %p190
    %p192 = scmp.ne.s32.totalorder %s180, %s181
    %p193 = scmp.eq.s32.totalorder %s24, 1
    %p194 = por %p192, %p193
    %p196 = scmp.ne.s32.totalorder %s181, %s195
    %p197 = scmp.eq.s32.totalorder %s24, 0
    %p198 = por %p196, %p197
    %s200 = sadd.s32 %s199, 1
    %p203 = scmp.eq.s32.totalorder %s18, 1
    %p204 = scmp.ne.s32.totalorder %s199, %s201
    %p205 = scmp.eq.s32.totalorder %s18, 0
    %p206 = por %p204, %p205
    %p207 = scmp.ne.s32.totalorder %s199, %s201
    %p208 = scmp.eq.s32.totalorder %s23, 1
    %p209 = por %p207, %p208
    %p210 = scmp.ne.s32.totalorder %s201, %s202
    %p211 = scmp.eq.s32.totalorder %s23, 0
    %p212 = por %p210, %p211
    %p213 = scmp.ne.s32.totalorder %s201, %s202
    %p214 = scmp.eq.s32.totalorder %s24, 1
    %p215 = por %p213, %p214
    %p217 = scmp.ne.s32.totalorder %s202, %s216
    %p218 = scmp.eq.s32.totalorder %s24, 0
    %p219 = por %p217, %p218
    %s221 = sadd.s32 %s220, 1
    %p224 = scmp.eq.s32.totalorder %s18, 1
    %p225 = scmp.ne.s32.totalorder %s220, %s222
    %p226 = scmp.eq.s32.totalorder %s18, 0
    %p227 = por %p225, %p226
    %p228 = scmp.ne.s32.totalorder %s220, %s222
    %p229 = scmp.eq.s32.totalorder %s23, 1
    %p230 = por %p228, %p229
    %p231 = scmp.ne.s32.totalorder %s222, %s223
    %p232 = scmp.eq.s32.totalorder %s23, 0
    %p233 = por %p231, %p232
    %p234 = scmp.ne.s32.totalorder %s222, %s223
    %p235 = scmp.eq.s32.totalorder %s24, 1
    %p236 = por %p234, %p235
    %p238 = scmp.ne.s32.totalorder %s223, %s237
    %p239 = scmp.eq.s32.totalorder %s24, 0
    %p240 = por %p238, %p239
    %s241 = ssub.s32 %s18, %s25
    %p242 = scmp.eq.s32.totalorder %s241, 0
    %s244 = sadd.s32 %s243, 1
    %s245 = scalar_select %p242, %s243, %s244
    %p248 = pneg %p242
    %p249 = scmp.eq.s32.totalorder %s18, 1
    %p250 = por %p248, %p249
    %p251 = scmp.ne.s32.totalorder %s243, %s246
    %p252 = scmp.eq.s32.totalorder %s18, 0
    %p253 = por %p251, %p252
    %p254 = scmp.ne.s32.totalorder %s243, %s246
    %p255 = scmp.eq.s32.totalorder %s23, 1
    %p256 = por %p254, %p255
    %p257 = scmp.ne.s32.totalorder %s246, %s247
    %p258 = scmp.eq.s32.totalorder %s23, 0
    %p259 = por %p257, %p258
    %p260 = scmp.ne.s32.totalorder %s246, %s247
    %p261 = scmp.eq.s32.totalorder %s24, 1
    %p262 = por %p260, %p261
    %p264 = scmp.ne.s32.totalorder %s247, %s263
    %p265 = scmp.eq.s32.totalorder %s24, 0
    %p266 = por %p264, %p265
    %s267 = ssub.s32 %s18, %s25
    %p268 = scmp.eq.s32.totalorder %s267, 0
    %s270 = sadd.s32 %s269, 1
    %s271 = scalar_select %p268, %s269, %s270
    %p274 = pneg %p268
    %p275 = scmp.eq.s32.totalorder %s18, 1
    %p276 = por %p274, %p275
    %p277 = scmp.ne.s32.totalorder %s269, %s272
    %p278 = scmp.eq.s32.totalorder %s18, 0
    %p279 = por %p277, %p278
    %p280 = scmp.ne.s32.totalorder %s269, %s272
    %p281 = scmp.eq.s32.totalorder %s23, 1
    %p282 = por %p280, %p281
    %p283 = scmp.ne.s32.totalorder %s272, %s273
    %p284 = scmp.eq.s32.totalorder %s23, 0
    %p285 = por %p283, %p284
    %p286 = scmp.ne.s32.totalorder %s272, %s273
    %p287 = scmp.eq.s32.totalorder %s24, 1
    %p288 = por %p286, %p287
    %p290 = scmp.ne.s32.totalorder %s273, %s289
    %p291 = scmp.eq.s32.totalorder %s24, 0
    %p292 = por %p290, %p291
    %p293 = scmp.le.s32.totalorder 1, %s18
    %p294 = scmp.lt.s32.totalorder %s18, 3
    %p295 = pnand %p293, %p294
    %p296 = pneg %p295
    // Predicated region
    $region9: #{bottleneck_forward.1} parent=5 // pred_check
      _
    $region10: #{bottleneck_forward.1} parent=5 // pred_check_branch
      %298 = sbr.rel (%p295) target = $region12
    $region11: #{bottleneck_forward.1} parent=5 // pred_region
      %s299 = ssub.s32 %s18, 1
      // Predicated region
      $region13: #{bottleneck_forward.1} parent=11 // pred_check
        %p300 = pneg %p65
      $region14: #{bottleneck_forward.1} parent=11 // pred_check_branch
        %302 = sbr.rel (%p300) target = $region16
      $region15: #{bottleneck_forward.1} parent=11 // pred_region
        _
      $region16: #{bottleneck_forward.1} parent=11 // pred_fallthru
        _
      // Predicated region
      $region17: #{bottleneck_forward.1} parent=11 // pred_check
        %p303 = pneg %p86
      $region18: #{bottleneck_forward.1} parent=11 // pred_check_branch
        %305 = sbr.rel (%p303) target = $region20
      $region19: #{bottleneck_forward.1} parent=11 // pred_region
        _
      $region20: #{bottleneck_forward.1} parent=11 // pred_fallthru
        _
      // Predicated region
      $region21: #{bottleneck_forward.1} parent=11 // pred_check
        %p306 = pneg %p107
      $region22: #{bottleneck_forward.1} parent=11 // pred_check_branch
        %308 = sbr.rel (%p306) target = $region24
      $region23: #{bottleneck_forward.1} parent=11 // pred_region
        _
      $region24: #{bottleneck_forward.1} parent=11 // pred_fallthru
        _
      // Predicated region
      $region25: #{bottleneck_forward.1} parent=11 // pred_check
        %p309 = pneg %p128
      $region26: #{bottleneck_forward.1} parent=11 // pred_check_branch
        %311 = sbr.rel (%p309) target = $region28
      $region27: #{bottleneck_forward.1} parent=11 // pred_region
        _
      $region28: #{bottleneck_forward.1} parent=11 // pred_fallthru
        _
      // Predicated region
      $region29: #{bottleneck_forward.1} parent=11 // pred_check
        %p312 = pneg %p149
      $region30: #{bottleneck_forward.1} parent=11 // pred_check_branch
        %314 = sbr.rel (%p312) target = $region32
      $region31: #{bottleneck_forward.1} parent=11 // pred_region
        _
      $region32: #{bottleneck_forward.1} parent=11 // pred_fallthru
        _
      // Predicated region
      $region33: #{bottleneck_forward.1} parent=11 // pred_check
        %p315 = pneg %p170
      $region34: #{bottleneck_forward.1} parent=11 // pred_check_branch
        %317 = sbr.rel (%p315) target = $region36
      $region35: #{bottleneck_forward.1} parent=11 // pred_region
        _
      $region36: #{bottleneck_forward.1} parent=11 // pred_fallthru
        _
      // Predicated region
      $region37: #{bottleneck_forward.1} parent=11 // pred_check
        %p318 = pneg %p191
      $region38: #{bottleneck_forward.1} parent=11 // pred_check_branch
        %320 = sbr.rel (%p318) target = $region40
      $region39: #{bottleneck_forward.1} parent=11 // pred_region
        _
      $region40: #{bottleneck_forward.1} parent=11 // pred_fallthru
        _
      // Predicated region
      $region41: #{bottleneck_forward.1} parent=11 // pred_check
        %p321 = pneg %p212
      $region42: #{bottleneck_forward.1} parent=11 // pred_check_branch
        %323 = sbr.rel (%p321) target = $region44
      $region43: #{bottleneck_forward.1} parent=11 // pred_region
        _
      $region44: #{bottleneck_forward.1} parent=11 // pred_fallthru
        _
      // Predicated region
      $region45: #{bottleneck_forward.1} parent=11 // pred_check
        %p324 = pneg %p233
      $region46: #{bottleneck_forward.1} parent=11 // pred_check_branch
        %326 = sbr.rel (%p324) target = $region48
      $region47: #{bottleneck_forward.1} parent=11 // pred_region
        _
      $region48: #{bottleneck_forward.1} parent=11 // pred_fallthru
        _
    $region12: #{bottleneck_forward.1} parent=5 // pred_fallthru
      _
    %p327 = scmp.lt.s32.totalorder %s18, 2
    // Predicated region
    $region49: #{bottleneck_forward.1} parent=5 // pred_check
      %p328 = pneg %p327
    $region50: #{bottleneck_forward.1} parent=5 // pred_check_branch
      %330 = sbr.rel (%p328) target = $region52
    $region51: #{bottleneck_forward.1} parent=5 // pred_region
      // Predicated region
      $region53: #{bottleneck_forward.1} parent=51 // pred_check
        %p331 = pneg %p38
      $region54: #{bottleneck_forward.1} parent=51 // pred_check_branch
        %333 = sbr.rel (%p331) target = $region56
      $region55: #{bottleneck_forward.1} parent=51 // pred_region
        %p334 = scmp.lt.s32.totalorder %s18, 1
        %s335 = scalar_select %p334, %s18, 1
        %s336 = smul.addr %s335, 4
        %s337 = smul.addr %s336, 8
        %s338 = scalar_lea.vmem %s0, %s337
      $region56: #{bottleneck_forward.1} parent=51 // pred_fallthru
        _
    $region52: #{bottleneck_forward.1} parent=5 // pred_fallthru
      _
    %p339 = scmp.le.s32.totalorder 1, %s18
    %p340 = scmp.lt.s32.totalorder %s18, 3
    %p341 = pnand %p339, %p340
    %p342 = pneg %p341
    // Predicated region
    $region57: #{bottleneck_forward.1} parent=5 // pred_check
      _
    $region58: #{bottleneck_forward.1} parent=5 // pred_check_branch
      %344 = sbr.rel (%p341) target = $region60
    $region59: #{bottleneck_forward.1} parent=5 // pred_region
      %s345 = ssub.s32 %s18, 1
      %p346 = scmp.lt.s32.totalorder %s23, 1
      %s347 = scalar_select %p346, %s23, 1
      %s348 = smul.addr %s347, 4
      %s349 = smul.addr %s348, 8
      %s350 = scalar_lea.vmem %s0, %s349
      %p351 = pneg %p44
      %p352 = pneg %p41
      %p353 = pneg %p65
      %p354 = pneg %p62
      %p355 = pneg %p86
      %p356 = pneg %p83
      %p357 = pneg %p107
      %p358 = pneg %p104
      %p359 = pneg %p128
      %p360 = pneg %p125
      %p361 = pneg %p149
      %p362 = pneg %p146
      %p363 = pneg %p170
      %p364 = pneg %p167
      %p365 = pneg %p191
      %p366 = pneg %p188
      %p367 = pneg %p212
      %p368 = pneg %p209
      %p369 = pneg %p233
      %p370 = pneg %p230
      %p371 = pneg %p259
      %p372 = pneg %p256
      %p373 = scmp.lt.s32.totalorder %s23, 1
      %s374 = scalar_select %p373, %s23, 1
      %s375 = smul.addr %s374, 4
      %s376 = smul.addr %s375, 8
      %s377 = scalar_lea.vmem %s10, %s376
      %p378 = pneg %p285
      %p379 = pneg %p282
      %p380 = scmp.lt.s32.totalorder %s23, 1
      %s381 = scalar_select %p380, %s23, 1
      %s382 = smul.addr %s381, 2
      %s383 = scalar_lea.vmem %s11, %s382
      %p384 = scmp.lt.s32.totalorder %s23, 1
      %s385 = scalar_select %p384, %s23, 1
      %s386 = smul.addr %s385, 4
      %s387 = smul.addr %s386, 8
      %s388 = scalar_lea.vmem %s0, %s387
      %p389 = scmp.lt.s32.totalorder %s23, 1
      %s390 = scalar_select %p389, %s23, 1
      %s391 = smul.addr %s390, 4
      %s392 = smul.addr %s391, 8
      %s393 = scalar_lea.vmem %s10, %s392
      %p394 = scmp.lt.s32.totalorder %s23, 1
      %s395 = scalar_select %p394, %s23, 1
      %s396 = smul.addr %s395, 2
      %s397 = scalar_lea.vmem %s11, %s396
      %v399 = vld [vmem:[%s388] sm:$0xff]
      %v400 = vld [vmem:[%s388 + $0x8] sm:$0xff]
      %v401 = vld [vmem:[%s388 + $0x10] sm:$0xff]
      %v402 = vld [vmem:[%s388 + $0x18] sm:$0xff]
      %403 = vrot.lane.b32.xlu0 %v399, 17
      %v404 = vpop.permute.xlu0 %403
      %405 = vrot.lane.b32.xlu0 %v401, 17
      %v406 = vpop.permute.xlu0 %405
      %407 = vrot.lane.b32.xlu0 %v400, 17
      %v408 = vpop.permute.xlu0 %407
      %409 = vrot.lane.b32.xlu0 %v402, 17
      %v410 = vpop.permute.xlu0 %409
      %v411 = vlaneseq
      %v412 = vand.u32 %v411, 127
      %vm413 = vcmp.lt.s32.totalorder %v412, 17
      %v414 = vsel %vm413, %v404, %v408
      %v415 = vsel %vm413, %v406, %v410
      %v416 = vsel %vm413, %v408, %v404
      %v417 = vsel %vm413, %v410, %v406
      %v418 = vld [vmem:[%s1] sm:$0x3]
      %v420 = vlaneseq
      %v421 = vshrl.u32 %v420, 7
      %v422 = vsub.s32 0, %v421
      %v423 = vrot.slane %v418, %v422
      %v424 = vlaneseq
      %v425 = vshrl.u32 %v424, 7
      %v426 = vsub.s32 1, %v425
      %v427 = vrot.slane %v418, %v426
      %v430 = vmul.f32 %v416, %v423
      %v431 = vmul.f32 %v414, %v427
      %v432 = vmul.f32 %v417, %v423
      %v433 = vmul.f32 %v415, %v427
      %434 = vrot.lane.b32.xlu0 %v399, 16
      %v435 = vpop.permute.xlu0 %434
      %436 = vrot.lane.b32.xlu0 %v401, 16
      %v437 = vpop.permute.xlu0 %436
      %438 = vrot.lane.b32.xlu0 %v400, 16
      %v439 = vpop.permute.xlu0 %438
      %440 = vrot.lane.b32.xlu0 %v402, 16
      %v441 = vpop.permute.xlu0 %440
      %vm442 = vcmp.lt.s32.totalorder %v412, 16
      %v443 = vsel %vm442, %v435, %v439
      %v444 = vsel %vm442, %v437, %v441
      %v445 = vsel %vm442, %v439, %v435
      %v446 = vsel %vm442, %v441, %v437
      %s447 = scalar_lea.vmem %s1, 2
      %v448 = vld [vmem:[%s447] sm:$0x3]
      %v450 = vlaneseq
      %v451 = vshrl.u32 %v450, 7
      %v452 = vsub.s32 0, %v451
      %v453 = vrot.slane %v448, %v452
      %v454 = vlaneseq
      %v455 = vshrl.u32 %v454, 7
      %v456 = vsub.s32 1, %v455
      %v457 = vrot.slane %v448, %v456
      %v460 = vmul.f32 %v445, %v453
      %v461 = vmul.f32 %v443, %v457
      %v462 = vmul.f32 %v446, %v453
      %v463 = vmul.f32 %v444, %v457
      %464 = vrot.lane.b32.xlu0 %v399, 15
      %v465 = vpop.permute.xlu0 %464
      %466 = vrot.lane.b32.xlu0 %v401, 15
      %v467 = vpop.permute.xlu0 %466
      %468 = vrot.lane.b32.xlu0 %v400, 15
      %v469 = vpop.permute.xlu0 %468
      %470 = vrot.lane.b32.xlu0 %v402, 15
      %v471 = vpop.permute.xlu0 %470
      %vm472 = vcmp.lt.s32.totalorder %v412, 15
      %v473 = vsel %vm472, %v465, %v469
      %v474 = vsel %vm472, %v467, %v471
      %v475 = vsel %vm472, %v469, %v465
      %v476 = vsel %vm472, %v471, %v467
      %s477 = scalar_lea.vmem %s1, 4
      %v478 = vld [vmem:[%s477] sm:$0x3]
      %v480 = vlaneseq
      %v481 = vshrl.u32 %v480, 7
      %v482 = vsub.s32 0, %v481
      %v483 = vrot.slane %v478, %v482
      %v484 = vlaneseq
      %v485 = vshrl.u32 %v484, 7
      %v486 = vsub.s32 1, %v485
      %v487 = vrot.slane %v478, %v486
      %v490 = vmul.f32 %v475, %v483
      %v491 = vmul.f32 %v473, %v487
      %v492 = vmul.f32 %v476, %v483
      %v493 = vmul.f32 %v474, %v487
      %494 = vrot.lane.b32.xlu0 %v399, 1
      %v495 = vpop.permute.xlu0 %494
      %496 = vrot.lane.b32.xlu0 %v401, 1
      %v497 = vpop.permute.xlu0 %496
      %498 = vrot.lane.b32.xlu0 %v400, 1
      %v499 = vpop.permute.xlu0 %498
      %500 = vrot.lane.b32.xlu0 %v402, 1
      %v501 = vpop.permute.xlu0 %500
      %vm502 = vcmp.lt.s32.totalorder %v412, 1
      %v503 = vsel %vm502, %v495, %v499
      %v504 = vsel %vm502, %v497, %v501
      %v505 = vsel %vm502, %v499, %v495
      %v506 = vsel %vm502, %v501, %v497
      %s507 = scalar_lea.vmem %s1, 6
      %v508 = vld [vmem:[%s507] sm:$0x3]
      %v510 = vlaneseq
      %v511 = vshrl.u32 %v510, 7
      %v512 = vsub.s32 0, %v511
      %v513 = vrot.slane %v508, %v512
      %v514 = vlaneseq
      %v515 = vshrl.u32 %v514, 7
      %v516 = vsub.s32 1, %v515
      %v517 = vrot.slane %v508, %v516
      %v520 = vmul.f32 %v505, %v513
      %v521 = vmul.f32 %v503, %v517
      %v522 = vmul.f32 %v506, %v513
      %v523 = vmul.f32 %v504, %v517
      %s524 = scalar_lea.vmem %s1, 8
      %v525 = vld [vmem:[%s524] sm:$0x3]
      %v527 = vlaneseq
      %v528 = vshrl.u32 %v527, 7
      %v529 = vsub.s32 0, %v528
      %v530 = vrot.slane %v525, %v529
      %v531 = vlaneseq
      %v532 = vshrl.u32 %v531, 7
      %v533 = vsub.s32 1, %v532
      %v534 = vrot.slane %v525, %v533
      %v537 = vmul.f32 %v399, %v530
      %v538 = vmul.f32 %v400, %v534
      %v539 = vmul.f32 %v401, %v530
      %v540 = vmul.f32 %v402, %v534
      %541 = vrot.lane.b32.xlu0 %v399, 127
      %v542 = vpop.permute.xlu0 %541
      %543 = vrot.lane.b32.xlu0 %v401, 127
      %v544 = vpop.permute.xlu0 %543
      %545 = vrot.lane.b32.xlu0 %v400, 127
      %v546 = vpop.permute.xlu0 %545
      %547 = vrot.lane.b32.xlu0 %v402, 127
      %v548 = vpop.permute.xlu0 %547
      %vm549 = vcmp.lt.s32.totalorder %v412, 127
      %v550 = vsel %vm549, %v542, %v546
      %v551 = vsel %vm549, %v544, %v548
      %v552 = vsel %vm549, %v546, %v542
      %v553 = vsel %vm549, %v548, %v544
      %s554 = scalar_lea.vmem %s1, 10
      %v555 = vld [vmem:[%s554] sm:$0x3]
      %v557 = vlaneseq
      %v558 = vshrl.u32 %v557, 7
      %v559 = vsub.s32 0, %v558
      %v560 = vrot.slane %v555, %v559
      %v561 = vlaneseq
      %v562 = vshrl.u32 %v561, 7
      %v563 = vsub.s32 1, %v562
      %v564 = vrot.slane %v555, %v563
      %v567 = vmul.f32 %v550, %v560
      %v568 = vmul.f32 %v552, %v564
      %v569 = vmul.f32 %v551, %v560
      %v570 = vmul.f32 %v553, %v564
      %571 = vrot.lane.b32.xlu0 %v399, 113
      %v572 = vpop.permute.xlu0 %571
      %573 = vrot.lane.b32.xlu0 %v401, 113
      %v574 = vpop.permute.xlu0 %573
      %575 = vrot.lane.b32.xlu0 %v400, 113
      %v576 = vpop.permute.xlu0 %575
      %577 = vrot.lane.b32.xlu0 %v402, 113
      %v578 = vpop.permute.xlu0 %577
      %vm579 = vcmp.lt.s32.totalorder %v412, 113
      %v580 = vsel %vm579, %v572, %v576
      %v581 = vsel %vm579, %v574, %v578
      %v582 = vsel %vm579, %v576, %v572
      %v583 = vsel %vm579, %v578, %v574
      %s584 = scalar_lea.vmem %s1, 12
      %v585 = vld [vmem:[%s584] sm:$0x3]
      %v587 = vlaneseq
      %v588 = vshrl.u32 %v587, 7
      %v589 = vsub.s32 0, %v588
      %v590 = vrot.slane %v585, %v589
      %v591 = vlaneseq
      %v592 = vshrl.u32 %v591, 7
      %v593 = vsub.s32 1, %v592
      %v594 = vrot.slane %v585, %v593
      %v597 = vmul.f32 %v580, %v590
      %v598 = vmul.f32 %v582, %v594
      %v599 = vmul.f32 %v581, %v590
      %v600 = vmul.f32 %v583, %v594
      %601 = vrot.lane.b32.xlu0 %v399, 112
      %v602 = vpop.permute.xlu0 %601
      %603 = vrot.lane.b32.xlu0 %v401, 112
      %v604 = vpop.permute.xlu0 %603
      %605 = vrot.lane.b32.xlu0 %v400, 112
      %v606 = vpop.permute.xlu0 %605
      %607 = vrot.lane.b32.xlu0 %v402, 112
      %v608 = vpop.permute.xlu0 %607
      %vm609 = vcmp.lt.s32.totalorder %v412, 112
      %v610 = vsel %vm609, %v602, %v606
      %v611 = vsel %vm609, %v604, %v608
      %v612 = vsel %vm609, %v606, %v602
      %v613 = vsel %vm609, %v608, %v604
      %s614 = scalar_lea.vmem %s1, 14
      %v615 = vld [vmem:[%s614] sm:$0x3]
      %v617 = vlaneseq
      %v618 = vshrl.u32 %v617, 7
      %v619 = vsub.s32 0, %v618
      %v620 = vrot.slane %v615, %v619
      %v621 = vlaneseq
      %v622 = vshrl.u32 %v621, 7
      %v623 = vsub.s32 1, %v622
      %v624 = vrot.slane %v615, %v623
      %v627 = vmul.f32 %v610, %v620
      %v628 = vmul.f32 %v612, %v624
      %v629 = vmul.f32 %v611, %v620
      %v630 = vmul.f32 %v613, %v624
      %631 = vrot.lane.b32.xlu0 %v399, 111
      %v632 = vpop.permute.xlu0 %631
      %633 = vrot.lane.b32.xlu0 %v401, 111
      %v634 = vpop.permute.xlu0 %633
      %635 = vrot.lane.b32.xlu0 %v400, 111
      %v636 = vpop.permute.xlu0 %635
      %637 = vrot.lane.b32.xlu0 %v402, 111
      %v638 = vpop.permute.xlu0 %637
      %vm639 = vcmp.lt.s32.totalorder %v412, 111
      %v640 = vsel %vm639, %v632, %v636
      %v641 = vsel %vm639, %v634, %v638
      %v642 = vsel %vm639, %v636, %v632
      %v643 = vsel %vm639, %v638, %v634
      %s644 = scalar_lea.vmem %s1, 16
      %v645 = vld [vmem:[%s644] sm:$0x3]
      %v647 = vlaneseq
      %v648 = vshrl.u32 %v647, 7
      %v649 = vsub.s32 0, %v648
      %v650 = vrot.slane %v645, %v649
      %v651 = vlaneseq
      %v652 = vshrl.u32 %v651, 7
      %v653 = vsub.s32 1, %v652
      %v654 = vrot.slane %v645, %v653
      %v657 = vmul.f32 %v640, %v650
      %v658 = vmul.f32 %v642, %v654
      %v659 = vmul.f32 %v641, %v650
      %v660 = vmul.f32 %v643, %v654
      %v661 = vld [vmem:[%s4] sm:$0xff]
      %v662 = vld [vmem:[%s4 + $0x8] sm:$0xff]
      %v663 = vld [vmem:[%s5] sm:$0xff]
      %665 = vset.pattern.permute.xlu0 0
      %666 = vperm.xlu0 %665, %v663
      %v667 = vpop.permute.xlu0 %666
      %vm669 = vcmask 130048
      %v671 = vsel %vm669, %v662, 0
      %673 = vmatprep.subr.mxu0 %v630
      %674 = vmatpush1.msra.mxu0 %v629
      %675 = vmatprep.subr.mxu0 %v628
      %676 = vmatpush1.msra.mxu0 %v627
      %677 = vmatprep.subr.mxu0 %v600
      %678 = vmatpush1.msra.mxu0 %v599
      %679 = vmatprep.subr.mxu0 %v598
      %680 = vmatpush1.msra.mxu0 %v597
      %681 = vmatprep.subr.mxu0 %v570
      %682 = vmatpush1.msra.mxu0 %v569
      %683 = vmatprep.subr.mxu0 %v568
      %684 = vmatpush1.msra.mxu0 %v567
      %685 = vmatprep.subr.mxu0 %v540
      %686 = vmatpush1.msra.mxu0 %v539
      %687 = vmatprep.subr.mxu0 %v538
      %688 = vmatpush1.msra.mxu0 %v537
      %689 = vmatprep.subr.mxu0 %v523
      %690 = vmatpush1.msra.mxu0 %v522
      %691 = vmatprep.subr.mxu0 %v521
      %692 = vmatpush1.msra.mxu0 %v520
      %693 = vmatprep.subr.mxu0 %v493
      %694 = vmatpush1.msra.mxu0 %v492
      %695 = vmatprep.subr.mxu0 %v491
      %696 = vmatpush1.msra.mxu0 %v490
      %697 = vmatprep.subr.mxu0 %v463
      %698 = vmatpush1.msra.mxu0 %v462
      %699 = vmatprep.subr.mxu0 %v461
      %700 = vmatpush1.msra.mxu0 %v460
      %701 = vmatprep.subr.mxu0 %v433
      %702 = vmatpush1.msra.mxu0 %v432
      %703 = vmatprep.subr.mxu0 %v431
      %704 = vmatpush1.msra.mxu0 %v430
      %705 = vmatprep.subr.mxu0 0.0
      %706 = vmatpush2.msra.mxu0 0.0
      %707 = vmatprep.subr.mxu0 0.0
      %708 = vmatpush2.msra.mxu0 0.0
      %709 = vmatprep.subr.mxu0 0.0
      %710 = vmatpush2.msra.mxu0 0.0
      %711 = vmatprep.subr.mxu0 0.0
      %712 = vmatpush2.msra.mxu0 0.0
      %713 = vmatprep.subr.mxu0 0.0
      %714 = vmatpush2.msra.mxu0 0.0
      %715 = vmatprep.subr.mxu0 0.0
      %716 = vmatpush2.msra.mxu0 0.0
      %717 = vmatprep.subr.mxu0 0.0
      %718 = vmatpush2.msra.mxu0 0.0
      %719 = vmatprep.subr.mxu0 0.0
      %720 = vmatpush2.msra.mxu0 0.0
      %721 = vmatprep.subr.mxu0 0.0
      %722 = vmatpush2.msra.mxu0 0.0
      %723 = vmatprep.subr.mxu0 0.0
      %724 = vmatpush2.msra.mxu0 0.0
      %725 = vmatprep.subr.mxu0 0.0
      %726 = vmatpush2.msra.mxu0 0.0
      %727 = vmatprep.subr.mxu0 0.0
      %728 = vmatpush2.msra.mxu0 0.0
      %729 = vmatprep.subr.mxu0 0.0
      %730 = vmatpush2.msra.mxu0 0.0
      %731 = vmatprep.subr.mxu0 0.0
      %732 = vmatpush2.msra.mxu0 0.0
      %733 = vmatprep.subr.mxu0 %v660
      %734 = vmatpush2.msra.mxu0 %v659
      %735 = vmatprep.subr.mxu0 %v658
      %736 = vmatpush2.msra.mxu0 %v657
      %737 = vmatprep.mubr.f32.mxu0 %v671
      %738 = vmatmul.mubr.f32.gmra.mxu0 %v661
      %v739 = vpop.f32.mrf.mxu0
      %v740 = vadd.f32 %v667, %v739
      %v741 = vpop.f32.mrf.mxu0
      %v742 = vadd.f32 %v667, %v741
      %743 = vdwg.mxu0
      %v744 = vxor.u32 %v740, 2147483648
      %v745 = vxor.u32 %v742, 2147483648
      %v746 = vmul.f32 %v744, 1.442695
      %v747 = vpow.pop %v746
      %v748 = vmul.f32 %v745, 1.442695
      %v749 = vpow.pop %v748
      %v750 = vadd.f32 %v747, 1.0
      %v751 = vadd.f32 %v749, 1.0
      %v752 = vrcp.pop %v750
      %v753 = vmul.f32 1.0, %v752
      %v754 = vrcp.pop %v751
      %v755 = vmul.f32 1.0, %v754
      %vm756 = vcmask 1045508
      %v757 = vsel %vm756, %v753, 0.0
      %v758 = vsel %vm756, %v755, 0.0
      %v759 = vadd.f32 %v757, %v758
      %760 = vadd.xlane.f32.xlu0 %v759
      %v761 = vpop.xlane.xlu0 %760
      %vm762 = vcmask 5124
      %763 = vst.msk [vmem:[%s397 - $0x4] sm:$0x30] %vm762, %v761
      %vm764 = vcmp.ge.f32.partialorder %v753, 0.5
      %vm765 = vcmp.ge.f32.partialorder %v755, 0.5
      %v766 = vsel %vm764, %v753, 0.0
      %v767 = vsel %vm765, %v755, 0.0
      %v768 = vmax.f32 %v740, 0.0
      %v769 = vmax.f32 %v742, 0.0
      %v770 = vlaneseq
      %v771 = vshrl.u32 %v770, 7
      %v772 = vsub.s32 4, %v771
      %v773 = vrot.slane %v766, %v772
      %v774 = vlaneseq
      %v775 = vshrl.u32 %v774, 7
      %v776 = vsub.s32 4, %v775
      %v777 = vrot.slane %v767, %v776
      %v778 = vmul.f32 %v768, %v773
      %v779 = vmul.f32 %v769, %v777
      %v780 = vld [vmem:[%s2] sm:$0x3]
      %781 = vrot.lane.b32.xlu0 %v778, 17
      %v782 = vpop.permute.xlu0 %781
      %783 = vrot.lane.b32.xlu0 %v779, 17
      %v784 = vpop.permute.xlu0 %783
      %v785 = vsel %vm413, %v782, %v784
      %v786 = vsel %vm413, %v784, %v782
      %v788 = vlaneseq
      %v789 = vshrl.u32 %v788, 7
      %v790 = vsub.s32 0, %v789
      %v791 = vrot.slane %v780, %v790
      %v792 = vlaneseq
      %v793 = vshrl.u32 %v792, 7
      %v794 = vsub.s32 1, %v793
      %v795 = vrot.slane %v780, %v794
      %v798 = vmul.f32 %v786, %v791
      %v799 = vmul.f32 %v785, %v795
      %v802 = vrot.slane %v766, 4
      %v803 = vrot.slane %v767, 4
      %806 = vrot.lane.b32.xlu0 %v802, 17
      %v807 = vpop.permute.xlu0 %806
      %808 = vrot.lane.b32.xlu0 %v803, 17
      %v809 = vpop.permute.xlu0 %808
      %v810 = vsel %vm413, %v807, %v809
      %v811 = vsel %vm413, %v809, %v807
      %v812 = vmul.f32 %v811, %v791
      %v813 = vmul.f32 %v810, %v795
      %s814 = scalar_lea.vmem %s2, 2
      %v815 = vld [vmem:[%s814] sm:$0x3]
      %816 = vrot.lane.b32.xlu0 %v778, 16
      %v817 = vpop.permute.xlu0 %816
      %818 = vrot.lane.b32.xlu0 %v779, 16
      %v819 = vpop.permute.xlu0 %818
      %v820 = vsel %vm442, %v817, %v819
      %v821 = vsel %vm442, %v819, %v817
      %v823 = vlaneseq
      %v824 = vshrl.u32 %v823, 7
      %v825 = vsub.s32 0, %v824
      %v826 = vrot.slane %v815, %v825
      %v827 = vlaneseq
      %v828 = vshrl.u32 %v827, 7
      %v829 = vsub.s32 1, %v828
      %v830 = vrot.slane %v815, %v829
      %v833 = vmul.f32 %v821, %v826
      %v834 = vmul.f32 %v820, %v830
      %v835 = vadd.f32 %v798, %v833
      %v836 = vadd.f32 %v799, %v834
      %837 = vrot.lane.b32.xlu0 %v802, 16
      %v838 = vpop.permute.xlu0 %837
      %839 = vrot.lane.b32.xlu0 %v803, 16
      %v840 = vpop.permute.xlu0 %839
      %v841 = vsel %vm442, %v838, %v840
      %v842 = vsel %vm442, %v840, %v838
      %v843 = vmul.f32 %v842, %v826
      %v844 = vmul.f32 %v841, %v830
      %v845 = vadd.f32 %v812, %v843
      %v846 = vadd.f32 %v813, %v844
      %s847 = scalar_lea.vmem %s2, 4
      %v848 = vld [vmem:[%s847] sm:$0x3]
      %849 = vrot.lane.b32.xlu0 %v778, 15
      %v850 = vpop.permute.xlu0 %849
      %851 = vrot.lane.b32.xlu0 %v779, 15
      %v852 = vpop.permute.xlu0 %851
      %v853 = vsel %vm472, %v850, %v852
      %v854 = vsel %vm472, %v852, %v850
      %v856 = vlaneseq
      %v857 = vshrl.u32 %v856, 7
      %v858 = vsub.s32 0, %v857
      %v859 = vrot.slane %v848, %v858
      %v860 = vlaneseq
      %v861 = vshrl.u32 %v860, 7
      %v862 = vsub.s32 1, %v861
      %v863 = vrot.slane %v848, %v862
      %v866 = vmul.f32 %v854, %v859
      %v867 = vmul.f32 %v853, %v863
      %v868 = vadd.f32 %v835, %v866
      %v869 = vadd.f32 %v836, %v867
      %870 = vrot.lane.b32.xlu0 %v802, 15
      %v871 = vpop.permute.xlu0 %870
      %872 = vrot.lane.b32.xlu0 %v803, 15
      %v873 = vpop.permute.xlu0 %872
      %v874 = vsel %vm472, %v871, %v873
      %v875 = vsel %vm472, %v873, %v871
      %v876 = vmul.f32 %v875, %v859
      %v877 = vmul.f32 %v874, %v863
      %v878 = vadd.f32 %v845, %v876
      %v879 = vadd.f32 %v846, %v877
      %s880 = scalar_lea.vmem %s2, 6
      %v881 = vld [vmem:[%s880] sm:$0x3]
      %882 = vrot.lane.b32.xlu0 %v778, 1
      %v883 = vpop.permute.xlu0 %882
      %884 = vrot.lane.b32.xlu0 %v779, 1
      %v885 = vpop.permute.xlu0 %884
      %v886 = vsel %vm502, %v883, %v885
      %v887 = vsel %vm502, %v885, %v883
      %v889 = vlaneseq
      %v890 = vshrl.u32 %v889, 7
      %v891 = vsub.s32 0, %v890
      %v892 = vrot.slane %v881, %v891
      %v893 = vlaneseq
      %v894 = vshrl.u32 %v893, 7
      %v895 = vsub.s32 1, %v894
      %v896 = vrot.slane %v881, %v895
      %v899 = vmul.f32 %v887, %v892
      %v900 = vmul.f32 %v886, %v896
      %v901 = vadd.f32 %v868, %v899
      %v902 = vadd.f32 %v869, %v900
      %903 = vrot.lane.b32.xlu0 %v802, 1
      %v904 = vpop.permute.xlu0 %903
      %905 = vrot.lane.b32.xlu0 %v803, 1
      %v906 = vpop.permute.xlu0 %905
      %v907 = vsel %vm502, %v904, %v906
      %v908 = vsel %vm502, %v906, %v904
      %v909 = vmul.f32 %v908, %v892
      %v910 = vmul.f32 %v907, %v896
      %v911 = vadd.f32 %v878, %v909
      %v912 = vadd.f32 %v879, %v910
      %s913 = scalar_lea.vmem %s2, 8
      %v914 = vld [vmem:[%s913] sm:$0x3]
      %v916 = vlaneseq
      %v917 = vshrl.u32 %v916, 7
      %v918 = vsub.s32 0, %v917
      %v919 = vrot.slane %v914, %v918
      %v920 = vlaneseq
      %v921 = vshrl.u32 %v920, 7
      %v922 = vsub.s32 1, %v921
      %v923 = vrot.slane %v914, %v922
      %v926 = vmul.f32 %v778, %v919
      %v927 = vmul.f32 %v779, %v923
      %v928 = vadd.f32 %v901, %v926
      %v929 = vadd.f32 %v902, %v927
      %v930 = vmul.f32 %v766, %v919
      %v931 = vmul.f32 %v767, %v923
      %v934 = vrot.slane %v930, 4
      %v935 = vrot.slane %v931, 4
      %v938 = vadd.f32 %v911, %v934
      %v939 = vadd.f32 %v912, %v935
      %s940 = scalar_lea.vmem %s2, 10
      %v941 = vld [vmem:[%s940] sm:$0x3]
      %942 = vrot.lane.b32.xlu0 %v778, 127
      %v943 = vpop.permute.xlu0 %942
      %944 = vrot.lane.b32.xlu0 %v779, 127
      %v945 = vpop.permute.xlu0 %944
      %v946 = vsel %vm549, %v943, %v945
      %v947 = vsel %vm549, %v945, %v943
      %v949 = vlaneseq
      %v950 = vshrl.u32 %v949, 7
      %v951 = vsub.s32 0, %v950
      %v952 = vrot.slane %v941, %v951
      %v953 = vlaneseq
      %v954 = vshrl.u32 %v953, 7
      %v955 = vsub.s32 1, %v954
      %v956 = vrot.slane %v941, %v955
      %v959 = vmul.f32 %v946, %v952
      %v960 = vmul.f32 %v947, %v956
      %v961 = vadd.f32 %v928, %v959
      %v962 = vadd.f32 %v929, %v960
      %963 = vrot.lane.b32.xlu0 %v802, 127
      %v964 = vpop.permute.xlu0 %963
      %965 = vrot.lane.b32.xlu0 %v803, 127
      %v966 = vpop.permute.xlu0 %965
      %v967 = vsel %vm549, %v964, %v966
      %v968 = vsel %vm549, %v966, %v964
      %v969 = vmul.f32 %v967, %v952
      %v970 = vmul.f32 %v968, %v956
      %v971 = vadd.f32 %v938, %v969
      %v972 = vadd.f32 %v939, %v970
      %s973 = scalar_lea.vmem %s2, 12
      %v974 = vld [vmem:[%s973] sm:$0x3]
      %975 = vrot.lane.b32.xlu0 %v778, 113
      %v976 = vpop.permute.xlu0 %975
      %977 = vrot.lane.b32.xlu0 %v779, 113
      %v978 = vpop.permute.xlu0 %977
      %v979 = vsel %vm579, %v976, %v978
      %v980 = vsel %vm579, %v978, %v976
      %v982 = vlaneseq
      %v983 = vshrl.u32 %v982, 7
      %v984 = vsub.s32 0, %v983
      %v985 = vrot.slane %v974, %v984
      %v986 = vlaneseq
      %v987 = vshrl.u32 %v986, 7
      %v988 = vsub.s32 1, %v987
      %v989 = vrot.slane %v974, %v988
      %v992 = vmul.f32 %v979, %v985
      %v993 = vmul.f32 %v980, %v989
      %v994 = vadd.f32 %v961, %v992
      %v995 = vadd.f32 %v962, %v993
      %996 = vrot.lane.b32.xlu0 %v802, 113
      %v997 = vpop.permute.xlu0 %996
      %998 = vrot.lane.b32.xlu0 %v803, 113
      %v999 = vpop.permute.xlu0 %998
      %v1000 = vsel %vm579, %v997, %v999
      %v1001 = vsel %vm579, %v999, %v997
      %v1002 = vmul.f32 %v1000, %v985
      %v1003 = vmul.f32 %v1001, %v989
      %v1004 = vadd.f32 %v971, %v1002
      %v1005 = vadd.f32 %v972, %v1003
      %s1006 = scalar_lea.vmem %s2, 14
      %v1007 = vld [vmem:[%s1006] sm:$0x3]
      %1008 = vrot.lane.b32.xlu0 %v778, 112
      %v1009 = vpop.permute.xlu0 %1008
      %1010 = vrot.lane.b32.xlu0 %v779, 112
      %v1011 = vpop.permute.xlu0 %1010
      %v1012 = vsel %vm609, %v1009, %v1011
      %v1013 = vsel %vm609, %v1011, %v1009
      %v1015 = vlaneseq
      %v1016 = vshrl.u32 %v1015, 7
      %v1017 = vsub.s32 0, %v1016
      %v1018 = vrot.slane %v1007, %v1017
      %v1019 = vlaneseq
      %v1020 = vshrl.u32 %v1019, 7
      %v1021 = vsub.s32 1, %v1020
      %v1022 = vrot.slane %v1007, %v1021
      %v1025 = vmul.f32 %v1012, %v1018
      %v1026 = vmul.f32 %v1013, %v1022
      %v1027 = vadd.f32 %v994, %v1025
      %v1028 = vadd.f32 %v995, %v1026
      %1029 = vrot.lane.b32.xlu0 %v802, 112
      %v1030 = vpop.permute.xlu0 %1029
      %1031 = vrot.lane.b32.xlu0 %v803, 112
      %v1032 = vpop.permute.xlu0 %1031
      %v1033 = vsel %vm609, %v1030, %v1032
      %v1034 = vsel %vm609, %v1032, %v1030
      %v1035 = vmul.f32 %v1033, %v1018
      %v1036 = vmul.f32 %v1034, %v1022
      %v1037 = vadd.f32 %v1004, %v1035
      %v1038 = vadd.f32 %v1005, %v1036
      %s1039 = scalar_lea.vmem %s2, 16
      %v1040 = vld [vmem:[%s1039] sm:$0x3]
      %1041 = vrot.lane.b32.xlu0 %v778, 111
      %v1042 = vpop.permute.xlu0 %1041
      %1043 = vrot.lane.b32.xlu0 %v779, 111
      %v1044 = vpop.permute.xlu0 %1043
      %v1045 = vsel %vm639, %v1042, %v1044
      %v1046 = vsel %vm639, %v1044, %v1042
      %v1048 = vlaneseq
      %v1049 = vshrl.u32 %v1048, 7
      %v1050 = vsub.s32 0, %v1049
      %v1051 = vrot.slane %v1040, %v1050
      %v1052 = vlaneseq
      %v1053 = vshrl.u32 %v1052, 7
      %v1054 = vsub.s32 1, %v1053
      %v1055 = vrot.slane %v1040, %v1054
      %v1058 = vmul.f32 %v1045, %v1051
      %v1059 = vmul.f32 %v1046, %v1055
      %v1060 = vadd.f32 %v1027, %v1058
      %v1061 = vadd.f32 %v1028, %v1059
      %1062 = vrot.lane.b32.xlu0 %v802, 111
      %v1063 = vpop.permute.xlu0 %1062
      %1064 = vrot.lane.b32.xlu0 %v803, 111
      %v1065 = vpop.permute.xlu0 %1064
      %v1066 = vsel %vm639, %v1063, %v1065
      %v1067 = vsel %vm639, %v1065, %v1063
      %v1068 = vmul.f32 %v1066, %v1051
      %v1069 = vmul.f32 %v1067, %v1055
      %v1070 = vadd.f32 %v1037, %v1068
      %v1071 = vadd.f32 %v1038, %v1069
      %v1072 = vadd.f32 %v1070, 1e-05
      %v1073 = vadd.f32 %v1071, 1e-05
      %v1074 = vrcp.pop %v1072
      %v1075 = vrcp.pop %v1073
      %v1076 = vlaneseq
      %v1077 = vshrl.u32 %v1076, 7
      %v1078 = vsub.s32 0, %v1077
      %v1079 = vrot.slane %v1074, %v1078
      %v1080 = vlaneseq
      %v1081 = vshrl.u32 %v1080, 7
      %v1082 = vsub.s32 0, %v1081
      %v1083 = vrot.slane %v1075, %v1082
      %v1084 = vmul.f32 %v1060, %v1079
      %v1085 = vmul.f32 %v1061, %v1083
      %v1086 = vsub.f32 1.0, %v766
      %v1087 = vsub.f32 1.0, %v767
      %v1088 = vlaneseq
      %v1089 = vshrl.u32 %v1088, 7
      %v1090 = vsub.s32 4, %v1089
      %v1091 = vrot.slane %v1086, %v1090
      %v1092 = vlaneseq
      %v1093 = vshrl.u32 %v1092, 7
      %v1094 = vsub.s32 4, %v1093
      %v1095 = vrot.slane %v1087, %v1094
      %v1096 = vmul.f32 %v1091, %v1084
      %v1097 = vmul.f32 %v1095, %v1085
      %v1098 = vadd.f32 %v778, %v1096
      %v1099 = vadd.f32 %v779, %v1097
      %1100 = vrot.lane.b32.xlu0 %v1098, 17
      %v1101 = vpop.permute.xlu0 %1100
      %1102 = vrot.lane.b32.xlu0 %v1099, 17
      %v1103 = vpop.permute.xlu0 %1102
      %v1104 = vsel %vm413, %v1101, %v1103
      %v1105 = vsel %vm413, %v1103, %v1101
      %v1106 = vld [vmem:[%s1] sm:$0x3]
      %v1108 = vlaneseq
      %v1109 = vshrl.u32 %v1108, 7
      %v1110 = vsub.s32 0, %v1109
      %v1111 = vrot.slane %v1106, %v1110
      %v1112 = vlaneseq
      %v1113 = vshrl.u32 %v1112, 7
      %v1114 = vsub.s32 1, %v1113
      %v1115 = vrot.slane %v1106, %v1114
      %v1118 = vmul.f32 %v1105, %v1111
      %v1119 = vmul.f32 %v1104, %v1115
      %1120 = vrot.lane.b32.xlu0 %v1098, 16
      %v1121 = vpop.permute.xlu0 %1120
      %1122 = vrot.lane.b32.xlu0 %v1099, 16
      %v1123 = vpop.permute.xlu0 %1122
      %v1124 = vsel %vm442, %v1121, %v1123
      %v1125 = vsel %vm442, %v1123, %v1121
      %v1126 = vld [vmem:[%s447] sm:$0x3]
      %v1128 = vlaneseq
      %v1129 = vshrl.u32 %v1128, 7
      %v1130 = vsub.s32 0, %v1129
      %v1131 = vrot.slane %v1126, %v1130
      %v1132 = vlaneseq
      %v1133 = vshrl.u32 %v1132, 7
      %v1134 = vsub.s32 1, %v1133
      %v1135 = vrot.slane %v1126, %v1134
      %v1138 = vmul.f32 %v1125, %v1131
      %v1139 = vmul.f32 %v1124, %v1135
      %1140 = vrot.lane.b32.xlu0 %v1098, 15
      %v1141 = vpop.permute.xlu0 %1140
      %1142 = vrot.lane.b32.xlu0 %v1099, 15
      %v1143 = vpop.permute.xlu0 %1142
      %v1144 = vsel %vm472, %v1141, %v1143
      %v1145 = vsel %vm472, %v1143, %v1141
      %v1146 = vld [vmem:[%s477] sm:$0x3]
      %v1148 = vlaneseq
      %v1149 = vshrl.u32 %v1148, 7
      %v1150 = vsub.s32 0, %v1149
      %v1151 = vrot.slane %v1146, %v1150
      %v1152 = vlaneseq
      %v1153 = vshrl.u32 %v1152, 7
      %v1154 = vsub.s32 1, %v1153
      %v1155 = vrot.slane %v1146, %v1154
      %v1158 = vmul.f32 %v1145, %v1151
      %v1159 = vmul.f32 %v1144, %v1155
      %1160 = vrot.lane.b32.xlu0 %v1098, 1
      %v1161 = vpop.permute.xlu0 %1160
      %1162 = vrot.lane.b32.xlu0 %v1099, 1
      %v1163 = vpop.permute.xlu0 %1162
      %v1164 = vsel %vm502, %v1161, %v1163
      %v1165 = vsel %vm502, %v1163, %v1161
      %v1166 = vld [vmem:[%s507] sm:$0x3]
      %v1168 = vlaneseq
      %v1169 = vshrl.u32 %v1168, 7
      %v1170 = vsub.s32 0, %v1169
      %v1171 = vrot.slane %v1166, %v1170
      %v1172 = vlaneseq
      %v1173 = vshrl.u32 %v1172, 7
      %v1174 = vsub.s32 1, %v1173
      %v1175 = vrot.slane %v1166, %v1174
      %v1178 = vmul.f32 %v1165, %v1171
      %v1179 = vmul.f32 %v1164, %v1175
      %v1180 = vld [vmem:[%s524] sm:$0x3]
      %v1182 = vlaneseq
      %v1183 = vshrl.u32 %v1182, 7
      %v1184 = vsub.s32 0, %v1183
      %v1185 = vrot.slane %v1180, %v1184
      %v1186 = vlaneseq
      %v1187 = vshrl.u32 %v1186, 7
      %v1188 = vsub.s32 1, %v1187
      %v1189 = vrot.slane %v1180, %v1188
      %v1192 = vmul.f32 %v1098, %v1185
      %v1193 = vmul.f32 %v1099, %v1189
      %1194 = vrot.lane.b32.xlu0 %v1098, 127
      %v1195 = vpop.permute.xlu0 %1194
      %1196 = vrot.lane.b32.xlu0 %v1099, 127
      %v1197 = vpop.permute.xlu0 %1196
      %v1198 = vsel %vm549, %v1195, %v1197
      %v1199 = vsel %vm549, %v1197, %v1195
      %v1200 = vld [vmem:[%s554] sm:$0x3]
      %v1202 = vlaneseq
      %v1203 = vshrl.u32 %v1202, 7
      %v1204 = vsub.s32 0, %v1203
      %v1205 = vrot.slane %v1200, %v1204
      %v1206 = vlaneseq
      %v1207 = vshrl.u32 %v1206, 7
      %v1208 = vsub.s32 1, %v1207
      %v1209 = vrot.slane %v1200, %v1208
      %v1212 = vmul.f32 %v1198, %v1205
      %v1213 = vmul.f32 %v1199, %v1209
      %1214 = vrot.lane.b32.xlu0 %v1098, 113
      %v1215 = vpop.permute.xlu0 %1214
      %1216 = vrot.lane.b32.xlu0 %v1099, 113
      %v1217 = vpop.permute.xlu0 %1216
      %v1218 = vsel %vm579, %v1215, %v1217
      %v1219 = vsel %vm579, %v1217, %v1215
      %v1220 = vld [vmem:[%s584] sm:$0x3]
      %v1222 = vlaneseq
      %v1223 = vshrl.u32 %v1222, 7
      %v1224 = vsub.s32 0, %v1223
      %v1225 = vrot.slane %v1220, %v1224
      %v1226 = vlaneseq
      %v1227 = vshrl.u32 %v1226, 7
      %v1228 = vsub.s32 1, %v1227
      %v1229 = vrot.slane %v1220, %v1228
      %v1232 = vmul.f32 %v1218, %v1225
      %v1233 = vmul.f32 %v1219, %v1229
      %1234 = vrot.lane.b32.xlu0 %v1098, 112
      %v1235 = vpop.permute.xlu0 %1234
      %1236 = vrot.lane.b32.xlu0 %v1099, 112
      %v1237 = vpop.permute.xlu0 %1236
      %v1238 = vsel %vm609, %v1235, %v1237
      %v1239 = vsel %vm609, %v1237, %v1235
      %v1240 = vld [vmem:[%s614] sm:$0x3]
      %v1242 = vlaneseq
      %v1243 = vshrl.u32 %v1242, 7
      %v1244 = vsub.s32 0, %v1243
      %v1245 = vrot.slane %v1240, %v1244
      %v1246 = vlaneseq
      %v1247 = vshrl.u32 %v1246, 7
      %v1248 = vsub.s32 1, %v1247
      %v1249 = vrot.slane %v1240, %v1248
      %v1252 = vmul.f32 %v1238, %v1245
      %v1253 = vmul.f32 %v1239, %v1249
      %1254 = vrot.lane.b32.xlu0 %v1098, 111
      %v1255 = vpop.permute.xlu0 %1254
      %1256 = vrot.lane.b32.xlu0 %v1099, 111
      %v1257 = vpop.permute.xlu0 %1256
      %v1258 = vsel %vm639, %v1255, %v1257
      %v1259 = vsel %vm639, %v1257, %v1255
      %v1260 = vld [vmem:[%s644] sm:$0x3]
      %v1262 = vlaneseq
      %v1263 = vshrl.u32 %v1262, 7
      %v1264 = vsub.s32 0, %v1263
      %v1265 = vrot.slane %v1260, %v1264
      %v1266 = vlaneseq
      %v1267 = vshrl.u32 %v1266, 7
      %v1268 = vsub.s32 1, %v1267
      %v1269 = vrot.slane %v1260, %v1268
      %v1272 = vmul.f32 %v1258, %v1265
      %v1273 = vmul.f32 %v1259, %v1269
      %v1274 = vpack.c.bf16 %v1138, %v1118
      %v1275 = vpack.c.bf16 %v1139, %v1119
      %v1276 = vpack.c.bf16 %v1178, %v1158
      %v1277 = vpack.c.bf16 %v1179, %v1159
      %v1278 = vpack.c.bf16 %v1212, %v1192
      %v1279 = vpack.c.bf16 %v1213, %v1193
      %v1280 = vpack.c.bf16 %v1252, %v1232
      %v1281 = vpack.c.bf16 %v1253, %v1233
      %v1282 = vpack.c.bf16 %v1272, %v1272
      %v1283 = vpack.c.bf16 %v1273, %v1273
      %v1284 = vld [vmem:[%s6] sm:$0x3]
      %v1285 = vld [vmem:[%s7] sm:$0xf]
      %1287 = vset.pattern.permute.xlu0 0
      %1288 = vperm.xlu0 %1287, %v1285
      %v1289 = vpop.permute.xlu0 %1288
      %vm1291 = vcmask 588800
      %v1293 = vsel %vm1291, %v1284, 0
      %vm1295 = vcmask 1043456
      %v1297 = vsel %vm1295, %v1282, 0
      %v1300 = vsel %vm1295, %v1283, 0
      %1302 = vmatprep.subr.bf16.mxu0 0
      %1303 = vmatpush1.bf16.msra.mxu0 0
      %1304 = vmatprep.subr.bf16.mxu0 0
      %1305 = vmatpush1.bf16.msra.mxu0 0
      %1306 = vmatprep.subr.bf16.mxu0 0
      %1307 = vmatpush1.bf16.msra.mxu0 0
      %1308 = vmatprep.subr.bf16.mxu0 %v1300
      %1309 = vmatpush1.bf16.msra.mxu0 %v1297
      %1310 = vmatprep.subr.bf16.mxu0 %v1281
      %1311 = vmatpush1.bf16.msra.mxu0 %v1280
      %1312 = vmatprep.subr.bf16.mxu0 %v1279
      %1313 = vmatpush1.bf16.msra.mxu0 %v1278
      %1314 = vmatprep.subr.bf16.mxu0 %v1277
      %1315 = vmatpush1.bf16.msra.mxu0 %v1276
      %1316 = vmatprep.subr.bf16.mxu0 %v1275
      %1317 = vmatpush1.bf16.msra.mxu0 %v1274
      %1318 = vmatprep.subr.bf16.mxu0 0
      %1319 = vmatpush2.bf16.msra.mxu0 0
      %1320 = vmatprep.subr.bf16.mxu0 0
      %1321 = vmatpush2.bf16.msra.mxu0 0
      %1322 = vmatprep.subr.bf16.mxu0 0
      %1323 = vmatpush2.bf16.msra.mxu0 0
      %1324 = vmatprep.subr.bf16.mxu0 0
      %1325 = vmatpush2.bf16.msra.mxu0 0
      %1326 = vmatprep.subr.bf16.mxu0 0
      %1327 = vmatpush2.bf16.msra.mxu0 0
      %1328 = vmatprep.subr.bf16.mxu0 0
      %1329 = vmatpush2.bf16.msra.mxu0 0
      %1330 = vmatprep.subr.bf16.mxu0 0
      %1331 = vmatpush2.bf16.msra.mxu0 0
      %1332 = vmatprep.subr.bf16.mxu0 0
      %1333 = vmatpush2.bf16.msra.mxu0 0
      %1334 = vmatprep.mubr.bf16.mxu0 0
      %1335 = vmatmul.mubr.bf16.gmra.mxu0 %v1293
      %v1336 = vpop.f32.mrf.mxu0
      %v1337 = vadd.f32 %v1289, %v1336
      %v1338 = vpop.f32.mrf.mxu0
      %v1339 = vadd.f32 %v1289, %v1338
      %v1340 = vpop.f32.mrf.mxu0
      %v1341 = vpop.f32.mrf.mxu0
      %1342 = vdwg.mxu0
      %v1343 = vmax.f32 %v1337, 0.0
      %v1344 = vmax.f32 %v1339, 0.0
      %v1345 = vlaneseq
      %v1346 = vshrl.u32 %v1345, 7
      %v1347 = vsub.s32 5, %v1346
      %v1348 = vrot.slane %v766, %v1347
      %v1349 = vlaneseq
      %v1350 = vshrl.u32 %v1349, 7
      %v1351 = vsub.s32 5, %v1350
      %v1352 = vrot.slane %v767, %v1351
      %v1353 = vmul.f32 %v1343, %v1348
      %v1354 = vmul.f32 %v1344, %v1352
      %v1355 = vld [vmem:[%s3] sm:$0x3]
      %1356 = vrot.lane.b32.xlu0 %v1353, 17
      %v1357 = vpop.permute.xlu0 %1356
      %1358 = vrot.lane.b32.xlu0 %v1354, 17
      %v1359 = vpop.permute.xlu0 %1358
      %v1360 = vsel %vm413, %v1357, %v1359
      %v1361 = vsel %vm413, %v1359, %v1357
      %v1363 = vlaneseq
      %v1364 = vshrl.u32 %v1363, 7
      %v1365 = vsub.s32 0, %v1364
      %v1366 = vrot.slane %v1355, %v1365
      %v1367 = vlaneseq
      %v1368 = vshrl.u32 %v1367, 7
      %v1369 = vsub.s32 1, %v1368
      %v1370 = vrot.slane %v1355, %v1369
      %v1373 = vmul.f32 %v1361, %v1366
      %v1374 = vmul.f32 %v1360, %v1370
      %v1375 = vrot.slane %v766, 5
      %v1376 = vrot.slane %v767, 5
      %1379 = vrot.lane.b32.xlu0 %v1375, 17
      %v1380 = vpop.permute.xlu0 %1379
      %1381 = vrot.lane.b32.xlu0 %v1376, 17
      %v1382 = vpop.permute.xlu0 %1381
      %v1383 = vsel %vm413, %v1380, %v1382
      %v1384 = vsel %vm413, %v1382, %v1380
      %v1385 = vmul.f32 %v1384, %v1366
      %v1386 = vmul.f32 %v1383, %v1370
      %s1387 = scalar_lea.vmem %s3, 2
      %v1388 = vld [vmem:[%s1387] sm:$0x3]
      %1389 = vrot.lane.b32.xlu0 %v1353, 16
      %v1390 = vpop.permute.xlu0 %1389
      %1391 = vrot.lane.b32.xlu0 %v1354, 16
      %v1392 = vpop.permute.xlu0 %1391
      %v1393 = vsel %vm442, %v1390, %v1392
      %v1394 = vsel %vm442, %v1392, %v1390
      %v1396 = vlaneseq
      %v1397 = vshrl.u32 %v1396, 7
      %v1398 = vsub.s32 0, %v1397
      %v1399 = vrot.slane %v1388, %v1398
      %v1400 = vlaneseq
      %v1401 = vshrl.u32 %v1400, 7
      %v1402 = vsub.s32 1, %v1401
      %v1403 = vrot.slane %v1388, %v1402
      %v1406 = vmul.f32 %v1394, %v1399
      %v1407 = vmul.f32 %v1393, %v1403
      %v1408 = vadd.f32 %v1373, %v1406
      %v1409 = vadd.f32 %v1374, %v1407
      %1410 = vrot.lane.b32.xlu0 %v1375, 16
      %v1411 = vpop.permute.xlu0 %1410
      %1412 = vrot.lane.b32.xlu0 %v1376, 16
      %v1413 = vpop.permute.xlu0 %1412
      %v1414 = vsel %vm442, %v1411, %v1413
      %v1415 = vsel %vm442, %v1413, %v1411
      %v1416 = vmul.f32 %v1415, %v1399
      %v1417 = vmul.f32 %v1414, %v1403
      %v1418 = vadd.f32 %v1385, %v1416
      %v1419 = vadd.f32 %v1386, %v1417
      %s1420 = scalar_lea.vmem %s3, 4
      %v1421 = vld [vmem:[%s1420] sm:$0x3]
      %1422 = vrot.lane.b32.xlu0 %v1353, 15
      %v1423 = vpop.permute.xlu0 %1422
      %1424 = vrot.lane.b32.xlu0 %v1354, 15
      %v1425 = vpop.permute.xlu0 %1424
      %v1426 = vsel %vm472, %v1423, %v1425
      %v1427 = vsel %vm472, %v1425, %v1423
      %v1429 = vlaneseq
      %v1430 = vshrl.u32 %v1429, 7
      %v1431 = vsub.s32 0, %v1430
      %v1432 = vrot.slane %v1421, %v1431
      %v1433 = vlaneseq
      %v1434 = vshrl.u32 %v1433, 7
      %v1435 = vsub.s32 1, %v1434
      %v1436 = vrot.slane %v1421, %v1435
      %v1439 = vmul.f32 %v1427, %v1432
      %v1440 = vmul.f32 %v1426, %v1436
      %v1441 = vadd.f32 %v1408, %v1439
      %v1442 = vadd.f32 %v1409, %v1440
      %1443 = vrot.lane.b32.xlu0 %v1375, 15
      %v1444 = vpop.permute.xlu0 %1443
      %1445 = vrot.lane.b32.xlu0 %v1376, 15
      %v1446 = vpop.permute.xlu0 %1445
      %v1447 = vsel %vm472, %v1444, %v1446
      %v1448 = vsel %vm472, %v1446, %v1444
      %v1449 = vmul.f32 %v1448, %v1432
      %v1450 = vmul.f32 %v1447, %v1436
      %v1451 = vadd.f32 %v1418, %v1449
      %v1452 = vadd.f32 %v1419, %v1450
      %s1453 = scalar_lea.vmem %s3, 6
      %v1454 = vld [vmem:[%s1453] sm:$0x3]
      %1455 = vrot.lane.b32.xlu0 %v1353, 1
      %v1456 = vpop.permute.xlu0 %1455
      %1457 = vrot.lane.b32.xlu0 %v1354, 1
      %v1458 = vpop.permute.xlu0 %1457
      %v1459 = vsel %vm502, %v1456, %v1458
      %v1460 = vsel %vm502, %v1458, %v1456
      %v1462 = vlaneseq
      %v1463 = vshrl.u32 %v1462, 7
      %v1464 = vsub.s32 0, %v1463
      %v1465 = vrot.slane %v1454, %v1464
      %v1466 = vlaneseq
      %v1467 = vshrl.u32 %v1466, 7
      %v1468 = vsub.s32 1, %v1467
      %v1469 = vrot.slane %v1454, %v1468
      %v1472 = vmul.f32 %v1460, %v1465
      %v1473 = vmul.f32 %v1459, %v1469
      %v1474 = vadd.f32 %v1441, %v1472
      %v1475 = vadd.f32 %v1442, %v1473
      %1476 = vrot.lane.b32.xlu0 %v1375, 1
      %v1477 = vpop.permute.xlu0 %1476
      %1478 = vrot.lane.b32.xlu0 %v1376, 1
      %v1479 = vpop.permute.xlu0 %1478
      %v1480 = vsel %vm502, %v1477, %v1479
      %v1481 = vsel %vm502, %v1479, %v1477
      %v1482 = vmul.f32 %v1481, %v1465
      %v1483 = vmul.f32 %v1480, %v1469
      %v1484 = vadd.f32 %v1451, %v1482
      %v1485 = vadd.f32 %v1452, %v1483
      %s1486 = scalar_lea.vmem %s3, 8
      %v1487 = vld [vmem:[%s1486] sm:$0x3]
      %v1489 = vlaneseq
      %v1490 = vshrl.u32 %v1489, 7
      %v1491 = vsub.s32 0, %v1490
      %v1492 = vrot.slane %v1487, %v1491
      %v1493 = vlaneseq
      %v1494 = vshrl.u32 %v1493, 7
      %v1495 = vsub.s32 1, %v1494
      %v1496 = vrot.slane %v1487, %v1495
      %v1499 = vmul.f32 %v1353, %v1492
      %v1500 = vmul.f32 %v1354, %v1496
      %v1501 = vadd.f32 %v1474, %v1499
      %v1502 = vadd.f32 %v1475, %v1500
      %v1503 = vmul.f32 %v766, %v1492
      %v1504 = vmul.f32 %v767, %v1496
      %v1507 = vrot.slane %v1503, 5
      %v1508 = vrot.slane %v1504, 5
      %v1511 = vadd.f32 %v1484, %v1507
      %v1512 = vadd.f32 %v1485, %v1508
      %s1513 = scalar_lea.vmem %s3, 10
      %v1514 = vld [vmem:[%s1513] sm:$0x3]
      %1515 = vrot.lane.b32.xlu0 %v1353, 127
      %v1516 = vpop.permute.xlu0 %1515
      %1517 = vrot.lane.b32.xlu0 %v1354, 127
      %v1518 = vpop.permute.xlu0 %1517
      %v1519 = vsel %vm549, %v1516, %v1518
      %v1520 = vsel %vm549, %v1518, %v1516
      %v1522 = vlaneseq
      %v1523 = vshrl.u32 %v1522, 7
      %v1524 = vsub.s32 0, %v1523
      %v1525 = vrot.slane %v1514, %v1524
      %v1526 = vlaneseq
      %v1527 = vshrl.u32 %v1526, 7
      %v1528 = vsub.s32 1, %v1527
      %v1529 = vrot.slane %v1514, %v1528
      %v1532 = vmul.f32 %v1519, %v1525
      %v1533 = vmul.f32 %v1520, %v1529
      %v1534 = vadd.f32 %v1501, %v1532
      %v1535 = vadd.f32 %v1502, %v1533
      %1536 = vrot.lane.b32.xlu0 %v1375, 127
      %v1537 = vpop.permute.xlu0 %1536
      %1538 = vrot.lane.b32.xlu0 %v1376, 127
      %v1539 = vpop.permute.xlu0 %1538
      %v1540 = vsel %vm549, %v1537, %v1539
      %v1541 = vsel %vm549, %v1539, %v1537
      %v1542 = vmul.f32 %v1540, %v1525
      %v1543 = vmul.f32 %v1541, %v1529
      %v1544 = vadd.f32 %v1511, %v1542
      %v1545 = vadd.f32 %v1512, %v1543
      %s1546 = scalar_lea.vmem %s3, 12
      %v1547 = vld [vmem:[%s1546] sm:$0x3]
      %1548 = vrot.lane.b32.xlu0 %v1353, 113
      %v1549 = vpop.permute.xlu0 %1548
      %1550 = vrot.lane.b32.xlu0 %v1354, 113
      %v1551 = vpop.permute.xlu0 %1550
      %v1552 = vsel %vm579, %v1549, %v1551
      %v1553 = vsel %vm579, %v1551, %v1549
      %v1555 = vlaneseq
      %v1556 = vshrl.u32 %v1555, 7
      %v1557 = vsub.s32 0, %v1556
      %v1558 = vrot.slane %v1547, %v1557
      %v1559 = vlaneseq
      %v1560 = vshrl.u32 %v1559, 7
      %v1561 = vsub.s32 1, %v1560
      %v1562 = vrot.slane %v1547, %v1561
      %v1565 = vmul.f32 %v1552, %v1558
      %v1566 = vmul.f32 %v1553, %v1562
      %v1567 = vadd.f32 %v1534, %v1565
      %v1568 = vadd.f32 %v1535, %v1566
      %1569 = vrot.lane.b32.xlu0 %v1375, 113
      %v1570 = vpop.permute.xlu0 %1569
      %1571 = vrot.lane.b32.xlu0 %v1376, 113
      %v1572 = vpop.permute.xlu0 %1571
      %v1573 = vsel %vm579, %v1570, %v1572
      %v1574 = vsel %vm579, %v1572, %v1570
      %v1575 = vmul.f32 %v1573, %v1558
      %v1576 = vmul.f32 %v1574, %v1562
      %v1577 = vadd.f32 %v1544, %v1575
      %v1578 = vadd.f32 %v1545, %v1576
      %s1579 = scalar_lea.vmem %s3, 14
      %v1580 = vld [vmem:[%s1579] sm:$0x3]
      %1581 = vrot.lane.b32.xlu0 %v1353, 112
      %v1582 = vpop.permute.xlu0 %1581
      %1583 = vrot.lane.b32.xlu0 %v1354, 112
      %v1584 = vpop.permute.xlu0 %1583
      %v1585 = vsel %vm609, %v1582, %v1584
      %v1586 = vsel %vm609, %v1584, %v1582
      %v1588 = vlaneseq
      %v1589 = vshrl.u32 %v1588, 7
      %v1590 = vsub.s32 0, %v1589
      %v1591 = vrot.slane %v1580, %v1590
      %v1592 = vlaneseq
      %v1593 = vshrl.u32 %v1592, 7
      %v1594 = vsub.s32 1, %v1593
      %v1595 = vrot.slane %v1580, %v1594
      %v1598 = vmul.f32 %v1585, %v1591
      %v1599 = vmul.f32 %v1586, %v1595
      %v1600 = vadd.f32 %v1567, %v1598
      %v1601 = vadd.f32 %v1568, %v1599
      %1602 = vrot.lane.b32.xlu0 %v1375, 112
      %v1603 = vpop.permute.xlu0 %1602
      %1604 = vrot.lane.b32.xlu0 %v1376, 112
      %v1605 = vpop.permute.xlu0 %1604
      %v1606 = vsel %vm609, %v1603, %v1605
      %v1607 = vsel %vm609, %v1605, %v1603
      %v1608 = vmul.f32 %v1606, %v1591
      %v1609 = vmul.f32 %v1607, %v1595
      %v1610 = vadd.f32 %v1577, %v1608
      %v1611 = vadd.f32 %v1578, %v1609
      %s1612 = scalar_lea.vmem %s3, 16
      %v1613 = vld [vmem:[%s1612] sm:$0x3]
      %1614 = vrot.lane.b32.xlu0 %v1353, 111
      %v1615 = vpop.permute.xlu0 %1614
      %1616 = vrot.lane.b32.xlu0 %v1354, 111
      %v1617 = vpop.permute.xlu0 %1616
      %v1618 = vsel %vm639, %v1615, %v1617
      %v1619 = vsel %vm639, %v1617, %v1615
      %v1621 = vlaneseq
      %v1622 = vshrl.u32 %v1621, 7
      %v1623 = vsub.s32 0, %v1622
      %v1624 = vrot.slane %v1613, %v1623
      %v1625 = vlaneseq
      %v1626 = vshrl.u32 %v1625, 7
      %v1627 = vsub.s32 1, %v1626
      %v1628 = vrot.slane %v1613, %v1627
      %v1631 = vmul.f32 %v1618, %v1624
      %v1632 = vmul.f32 %v1619, %v1628
      %v1633 = vadd.f32 %v1600, %v1631
      %v1634 = vadd.f32 %v1601, %v1632
      %1635 = vrot.lane.b32.xlu0 %v1375, 111
      %v1636 = vpop.permute.xlu0 %1635
      %1637 = vrot.lane.b32.xlu0 %v1376, 111
      %v1638 = vpop.permute.xlu0 %1637
      %v1639 = vsel %vm639, %v1636, %v1638
      %v1640 = vsel %vm639, %v1638, %v1636
      %v1641 = vmul.f32 %v1639, %v1624
      %v1642 = vmul.f32 %v1640, %v1628
      %v1643 = vadd.f32 %v1610, %v1641
      %v1644 = vadd.f32 %v1611, %v1642
      %v1645 = vadd.f32 %v1643, 1e-05
      %v1646 = vadd.f32 %v1644, 1e-05
      %v1647 = vrcp.pop %v1645
      %v1648 = vrcp.pop %v1646
      %v1649 = vlaneseq
      %v1650 = vshrl.u32 %v1649, 7
      %v1651 = vsub.s32 0, %v1650
      %v1652 = vrot.slane %v1647, %v1651
      %v1653 = vlaneseq
      %v1654 = vshrl.u32 %v1653, 7
      %v1655 = vsub.s32 0, %v1654
      %v1656 = vrot.slane %v1648, %v1655
      %v1657 = vmul.f32 %v1633, %v1652
      %v1658 = vmul.f32 %v1634, %v1656
      %v1659 = vlaneseq
      %v1660 = vshrl.u32 %v1659, 7
      %v1661 = vsub.s32 5, %v1660
      %v1662 = vrot.slane %v1086, %v1661
      %v1663 = vlaneseq
      %v1664 = vshrl.u32 %v1663, 7
      %v1665 = vsub.s32 5, %v1664
      %v1666 = vrot.slane %v1087, %v1665
      %v1667 = vmul.f32 %v1662, %v1657
      %v1668 = vmul.f32 %v1666, %v1658
      %v1669 = vadd.f32 %v1353, %v1667
      %v1670 = vadd.f32 %v1354, %v1668
      %v1671 = vld [vmem:[%s8] sm:$0xf]
      %v1672 = vld [vmem:[%s8 + $0x4] sm:$0xf]
      %v1673 = vpack.c.bf16 %v1669, %v1669
      %v1674 = vpack.c.bf16 %v1670, %v1670
      %v1675 = vld [vmem:[%s9] sm:$0xff]
      %v1676 = vld [vmem:[%s9 + $0x8] sm:$0xff]
      %1678 = vset.pattern.permute.xlu0 0
      %1679 = vperm.xlu0 %1678, %v1675
      %v1680 = vpop.permute.xlu0 %1679
      %1683 = vset.pattern.permute.xlu0 0
      %1684 = vperm.xlu0 %1683, %v1676
      %v1685 = vpop.permute.xlu0 %1684
      %v1689 = vunpack.c.l.b16 %v1671
      %v1690 = vunpack.c.l.b16 %v1672
      %v1691 = vpack.c.b16 %v1690, %v1689
      %vm1692 = vcmask 31744
      %v1694 = vsel %vm1692, %v1691, 0
      %vm1696 = vcmask 1041408
      %v1698 = vsel %vm1696, %v1673, 0
      %v1701 = vsel %vm1696, %v1674, 0
      %1703 = vmatprep.subr.bf16.mxu0 0
      %1704 = vmatpush1.bf16.msra.mxu0 0
      %1705 = vmatprep.subr.bf16.mxu0 0
      %1706 = vmatpush1.bf16.msra.mxu0 0
      %1707 = vmatprep.subr.bf16.mxu0 0
      %1708 = vmatpush1.bf16.msra.mxu0 0
      %1709 = vmatprep.subr.bf16.mxu0 0
      %1710 = vmatpush1.bf16.msra.mxu0 0
      %1711 = vmatprep.subr.bf16.mxu0 0
      %1712 = vmatpush1.bf16.msra.mxu0 0
      %1713 = vmatprep.subr.bf16.mxu0 0
      %1714 = vmatpush1.bf16.msra.mxu0 0
      %1715 = vmatprep.subr.bf16.mxu0 0
      %1716 = vmatpush1.bf16.msra.mxu0 0
      %1717 = vmatprep.subr.bf16.mxu0 %v1701
      %1718 = vmatpush1.bf16.msra.mxu0 %v1698
      %1719 = vmatprep.subr.bf16.mxu0 0
      %1720 = vmatpush2.bf16.msra.mxu0 0
      %1721 = vmatprep.subr.bf16.mxu0 0
      %1722 = vmatpush2.bf16.msra.mxu0 0
      %1723 = vmatprep.subr.bf16.mxu0 0
      %1724 = vmatpush2.bf16.msra.mxu0 0
      %1725 = vmatprep.subr.bf16.mxu0 0
      %1726 = vmatpush2.bf16.msra.mxu0 0
      %1727 = vmatprep.subr.bf16.mxu0 0
      %1728 = vmatpush2.bf16.msra.mxu0 0
      %1729 = vmatprep.subr.bf16.mxu0 0
      %1730 = vmatpush2.bf16.msra.mxu0 0
      %1731 = vmatprep.subr.bf16.mxu0 0
      %1732 = vmatpush2.bf16.msra.mxu0 0
      %1733 = vmatprep.subr.bf16.mxu0 0
      %1734 = vmatpush2.bf16.msra.mxu0 0
      %1735 = vmatprep.mubr.bf16.mxu0 0
      %1736 = vmatmul.mubr.bf16.gmra.mxu0 %v1694
      %v1737 = vpop.f32.mrf.mxu0
      %v1738 = vadd.f32 %v1680, %v1737
      %v1739 = vpop.f32.mrf.mxu0
      %v1740 = vadd.f32 %v1680, %v1739
      %v1741 = vpop.f32.mrf.mxu0
      %v1742 = vadd.f32 %v1685, %v1741
      %v1743 = vpop.f32.mrf.mxu0
      %v1744 = vadd.f32 %v1685, %v1743
      %1745 = vdwg.mxu0
      %v1746 = vadd.f32 %v1738, %v399
      %v1747 = vadd.f32 %v1740, %v400
      %v1748 = vadd.f32 %v1742, %v401
      %v1749 = vadd.f32 %v1744, %v402
      %v1750 = vmax.f32 %v1746, 0.0
      %v1751 = vmax.f32 %v1747, 0.0
      %v1752 = vmax.f32 %v1748, 0.0
      %v1753 = vmax.f32 %v1749, 0.0
      %1754 = vst [vmem:[%s393] sm:$0xff] %v1750
      %1755 = vst [vmem:[%s393 + $0x8] sm:$0xff] %v1751
      %1756 = vst [vmem:[%s393 + $0x10] sm:$0xff] %v1752
      %1757 = vst [vmem:[%s393 + $0x18] sm:$0xff] %v1753
      %p1758 = scmp.lt.s32.totalorder %s23, 1
      %s1759 = scalar_select %p1758, %s23, 1
      %s1760 = smul.addr %s1759, 4
      %s1761 = smul.addr %s1760, 8
      %s1762 = scalar_lea.vmem %s10, %s1761
      %p1763 = scmp.lt.s32.totalorder %s23, 1
      %s1764 = scalar_select %p1763, %s23, 1
      %s1765 = smul.addr %s1764, 2
      %s1766 = scalar_lea.vmem %s11, %s1765
      // Predicated region
      $region61: #{bottleneck_forward.1} parent=59 // pred_check
        %p1767 = pneg %p256
      $region62: #{bottleneck_forward.1} parent=59 // pred_check_branch
        %1769 = sbr.rel (%p1767) target = $region64
      $region63: #{bottleneck_forward.1} parent=59 // pred_region
        _
      $region64: #{bottleneck_forward.1} parent=59 // pred_fallthru
        _
      // Predicated region
      $region65: #{bottleneck_forward.1} parent=59 // pred_check
        %p1770 = pneg %p282
      $region66: #{bottleneck_forward.1} parent=59 // pred_check_branch
        %1772 = sbr.rel (%p1770) target = $region68
      $region67: #{bottleneck_forward.1} parent=59 // pred_region
        _
      $region68: #{bottleneck_forward.1} parent=59 // pred_fallthru
        _
    $region60: #{bottleneck_forward.1} parent=5 // pred_fallthru
      _
    %p1773 = scmp.le.s32.totalorder 2, %s18
    // Predicated region
    $region69: #{bottleneck_forward.1} parent=5 // pred_check
      %p1774 = pneg %p1773
    $region70: #{bottleneck_forward.1} parent=5 // pred_check_branch
      %1776 = sbr.rel (%p1774) target = $region72
    $region71: #{bottleneck_forward.1} parent=5 // pred_region
      %s1777 = ssub.s32 %s18, 2
      // Predicated region
      $region73: #{bottleneck_forward.1} parent=71 // pred_check
        %p1778 = pneg %p262
      $region74: #{bottleneck_forward.1} parent=71 // pred_check_branch
        %1780 = sbr.rel (%p1778) target = $region76
      $region75: #{bottleneck_forward.1} parent=71 // pred_region
        %p1781 = scmp.lt.s32.totalorder %s24, 1
        %s1782 = scalar_select %p1781, %s24, 1
        %s1783 = smul.addr %s1782, 4
        %s1784 = smul.addr %s1783, 8
        %s1785 = scalar_lea.vmem %s10, %s1784
      $region76: #{bottleneck_forward.1} parent=71 // pred_fallthru
        _
      // Predicated region
      $region77: #{bottleneck_forward.1} parent=71 // pred_check
        %p1786 = pneg %p288
      $region78: #{bottleneck_forward.1} parent=71 // pred_check_branch
        %1788 = sbr.rel (%p1786) target = $region80
      $region79: #{bottleneck_forward.1} parent=71 // pred_region
        %p1789 = scmp.lt.s32.totalorder %s24, 1
        %s1790 = scalar_select %p1789, %s24, 1
        %s1791 = smul.addr %s1790, 2
        %s1792 = scalar_lea.vmem %s11, %s1791
      $region80: #{bottleneck_forward.1} parent=71 // pred_fallthru
        _
    $region72: #{bottleneck_forward.1} parent=5 // pred_fallthru
      _
  $region6: #{bottleneck_forward.1} parent=0 // loop_footer
    %s22 = sadd.s32 1, %s18
  $region7: #{bottleneck_forward.1} parent=0 // loop_footer_branch
    %17 = sbr.rel target = $region3
  $region8: #{bottleneck_forward.1} parent=0 // loop_exit
    _

</llo_original>
